<compile_context>
chip_gen: v7x
topology: tpu7x:2x2x1
jax: 0.10.0
libtpu: 0.0.40
codegen_flags: <defaults>
</compile_context>

<pallas_src>
from functools import partial

import numpy as np
import jax
import jax.numpy as jnp
from jax import lax
from jax.experimental import pallas as pl
from jax.experimental.pallas import tpu as pltpu

# ----------------------------- model constants ------------------------------
R_MAX = 5.0
NUM_BESSEL = 8
NUM_POLY = 5
MAX_ELL = 1
NUM_SH = (MAX_ELL + 1) ** 2          # 4 spherical components (l <= 1)
CHANNELS = 8                         # hidden_irreps = 8x0e + 8x1o
MLP_HIDDEN = 16                      # MLP_irreps = 16x0e
RADIAL_HIDDEN = 16
NUM_ELEMENTS = 3
NUM_INTERACTIONS = 2
AVG_NUM_NEIGHBORS = 3.0
FEAT_DIM = NUM_SH * CHANNELS         # 32
NUM_CONTRIB = NUM_INTERACTIONS + 2   # [E0, pair(=0), layer-1, layer-2]


# ----------------------------- pallas plumbing ------------------------------
def _full_spec(shape):
    nd = len(shape)
    return pl.BlockSpec(shape, lambda i, _nd=nd: (0,) * _nd)


def _dot(a, b):
    return jnp.dot(a, b, preferred_element_type=jnp.float32)


def _silu(x):
    # exact sigmoid (the approx EUP reciprocal was flagged as a correctness risk)
    return x * (1.0 / (1.0 + jnp.exp(-x)))


# ------------------------------ fused kernel ---------------------------------
def mace_fused_kernel(attrs_ref, vec_ref, send_idx_ref, recv_idx_ref, batch_idx_ref,
                      aeT_ref, wembT_ref,
                      wupT_ref, wr1_all_ref, wr2_all_ref, wlinskipT_ref,
                      wro_linT_ref, wro1T_ref, wro2T_ref,
                      contrib_ref, *, num_graphs):
    C = CHANNELS
    F = FEAT_DIM
    attrs = attrs_ref[...]                        # [Z, N] f32  (feature-major)
    vec = vec_ref[...]                            # [3, E] f32  (feature-major)
    N = attrs.shape[1]
    E = vec.shape[1]

    # ---- gather / scatter / per-graph pooling operators from int32 indices ----
    # one-hots are exact in f32, built in VMEM (no O(N*E) HBM buffers, no bf16).
    send_oh = (lax.broadcasted_iota(jnp.int32, (N, E), 0)
               == send_idx_ref[...]).astype(jnp.float32)          # [N, E]
    recv_oh = (lax.broadcasted_iota(jnp.int32, (E, N), 1)
               == recv_idx_ref[...]).astype(jnp.float32)          # [E, N]
    graph_oh = (lax.broadcasted_iota(jnp.int32, (N, num_graphs), 1)
                == batch_idx_ref[...]).astype(jnp.float32)        # [N, G]
    # TODO(synk): for large graphs replace the dense one-hot gather/scatter with
    #             index-driven edge tiling (scalar prefetch + node-tile
    #             accumulators) and mark that grid axis "parallel" (v7x 2 TCs).

    # -------- edge embedding: spherical harmonics + Bessel * poly cutoff -----
    r2 = (vec[0:1, :] * vec[0:1, :] + vec[1:2, :] * vec[1:2, :]
          + vec[2:3, :] * vec[2:3, :])                            # [1, E]
    inv_r = lax.rsqrt(jnp.maximum(r2, 1e-18))
    r = r2 * inv_r
    u = vec * inv_r                                               # [3, E] unit vectors

    sqrt3 = float(np.sqrt(3.0))
    ones_c = jnp.ones((C, 1), jnp.float32)
    # component-normalized real SH, l<=1, order [1, y, z, x]; the l=0 part is
    # identically 1 so only l=1 is materialized, sublane-replicated once to
    # channel width (hoisted out of the layer loop).
    sh_rep1 = jnp.concatenate(
        [ones_c * (sqrt3 * u[1:2, :]),
         ones_c * (sqrt3 * u[2:3, :]),
         ones_c * (sqrt3 * u[0:1, :])], axis=0)                   # [3C, E]

    n_idx = (lax.broadcasted_iota(jnp.int32, (NUM_BESSEL, 1), 0) + 1).astype(jnp.float32)
    pref = float(np.sqrt(2.0 / R_MAX))
    bessel = pref * jnp.sin(n_idx * (np.pi / R_MAX) * r) * inv_r  # [B, E]

    p = float(NUM_POLY)
    x = r * (1.0 / R_MAX)
    x2 = x * x
    x4 = x2 * x2
    x5 = x4 * x
    x6 = x5 * x
    x7 = x6 * x
    f_cut = (1.0
             - ((p + 1.0) * (p + 2.0) / 2.0) * x5
             + (p * (p + 2.0)) * x6
             - (p * (p + 1.0) / 2.0) * x7)
    f_cut = f_cut * jnp.where(x < 1.0, 1.0, 0.0)
    # degenerate (r ~ 0) edges contribute zero radial weight instead of huge
    # clamped values (the messages they drive become exactly zero).
    edge_ok = jnp.where(r2 > 1e-12, 1.0, 0.0)
    rad = bessel * f_cut * edge_ok                                # [B, E]

    # ------ radial MLP hoisted: both layers' TP weights in one shot -----------
    # wr1_all [L*H, B], wr2_all block-diag [L*4C, L*H]  ->  w_all [L*4C, E]
    w_all = _dot(wr2_all_ref[...], _silu(_dot(wr1_all_ref[...], rad)))

    # -------------------- node embedding + atomic reference E0 ----------------
    h = jnp.concatenate(
        [_dot(wembT_ref[...], attrs), jnp.zeros((3 * C, N), jnp.float32)], axis=0)  # [4C, N]
    e0_node = _dot(aeT_ref[...], attrs)                           # [1, N]
    node_e_rows = [e0_node, jnp.zeros_like(e0_node)]              # pair_repulsion=False

    inv_avg = float(1.0 / AVG_NUM_NEIGHBORS)
    inv_sqrt3 = float(1.0 / np.sqrt(3.0))

    # --------------------------- interaction layers ---------------------------
    # TODO(synk): exact e3nn path normalization and higher-ell CG paths are not
    #             reproduced; only the l<=1 paths (0x0->0, 0x1->1, 1x0->1, 1x1->0).
    for t in range(NUM_INTERACTIONS):
        wupT = wupT_ref[t]            # [4C, 4C]           block-diag(wup0, wup1 x3)^T
        wls = wlinskipT_ref[t]        # [4C, 4C*(1+Z)]     [wlin^T | wskip_z^T ...]

        # linear_up over all irreps (single MXU push), then sender gather
        u_feat = _dot(wupT, h)                                    # [4C, N]
        s = _dot(u_feat, send_oh)                                 # [4C, E]
        w = w_all[t * F:(t + 1) * F, :]                           # [4C, E]

        s0 = s[0:C, :]
        s1 = s[C:4 * C, :]
        w_a = w[0:C, :]
        w_b = w[C:2 * C, :]
        w_c = w[2 * C:3 * C, :]
        w_d = w[3 * C:4 * C, :]

        # l=0 message: 0x0->0 and 1x1->0 paths (l=0 SH == 1)
        p_l1 = s1 * sh_rep1                                       # [3C, E]
        dot_l1 = p_l1[0:C, :] + p_l1[C:2 * C, :] + p_l1[2 * C:3 * C, :]
        m0 = w_a * s0 + w_d * (inv_sqrt3 * dot_l1)                # [C, E]
        # l=1 messages: 0x1->1 and 1x0->1 paths (sublane concats on 8-boundaries)
        wb_s0 = w_b * s0
        m1 = (jnp.concatenate([wb_s0, wb_s0, wb_s0], axis=0) * sh_rep1
              + jnp.concatenate([w_c, w_c, w_c], axis=0) * s1)    # [3C, E]
        m_cat = jnp.concatenate([m0, m1], axis=0)                 # [4C, E]

        # scatter-sum to receivers / avg_num_neighbors
        a = _dot(m_cat, recv_oh) * inv_avg                        # [4C, N]

        # fused post-scatter linear + element-dependent skip (K = 4C*(1+Z) = 128)
        x_fused = jnp.concatenate(
            [a] + [attrs[z:z + 1, :] * h for z in range(NUM_ELEMENTS)], axis=0)  # [128, N]
        h = _dot(wls, x_fused)                                    # [4C, N]

        # per-layer readout (linear for all but last, gated silu MLP for last)
        if t == NUM_INTERACTIONS - 1:
            e_node = _dot(wro2T_ref[...], _silu(_dot(wro1T_ref[...], h[0:C, :])))
        else:
            e_node = _dot(wro_linT_ref[...], h[0:C, :])
        node_e_rows.append(e_node)                                # [1, N]

    # per-graph scatter-sum of every energy contribution in one matmul / store
    node_e = jnp.concatenate(node_e_rows, axis=0)                 # [L+2, N]
    contrib_ref[...] = _dot(node_e, graph_oh)                     # [L+2, G]


# ----------------------------- parameter setup -------------------------------
def init_params(key):
    def w(k, shape, fan_in):
        return jax.random.normal(k, shape, dtype=jnp.float32) / np.sqrt(fan_in)

    keys = jax.random.split(key, 64)
    ki = iter(range(64))
    p = {}
    p["atomic_energies"] = jax.random.normal(keys[next(ki)], (NUM_ELEMENTS, 1), jnp.float32)
    p["w_emb"] = w(keys[next(ki)], (NUM_ELEMENTS, CHANNELS), NUM_ELEMENTS)
    p["layers"] = []
    for _ in range(NUM_INTERACTIONS):
        lp = {
            "wup0": w(keys[next(ki)], (CHANNELS, CHANNELS), CHANNELS),
            "wup1": w(keys[next(ki)], (CHANNELS, CHANNELS), CHANNELS),
            "wr1": w(keys[next(ki)], (NUM_BESSEL, RADIAL_HIDDEN), NUM_BESSEL),
            "wr2": w(keys[next(ki)], (RADIAL_HIDDEN, NUM_SH * CHANNELS), RADIAL_HIDDEN),
            "wlin0": w(keys[next(ki)], (CHANNELS, CHANNELS), CHANNELS),
            "wlin1": w(keys[next(ki)], (CHANNELS, CHANNELS), CHANNELS),
            "wskip0": w(keys[next(ki)], (NUM_ELEMENTS, CHANNELS, CHANNELS), CHANNELS),
            "wskip1": w(keys[next(ki)], (NUM_ELEMENTS, CHANNELS, CHANNELS), CHANNELS),
        }
        p["layers"].append(lp)
    p["readout_lin"] = w(keys[next(ki)], (CHANNELS, 1), CHANNELS)
    p["readout_mlp_w1"] = w(keys[next(ki)], (CHANNELS, MLP_HIDDEN), CHANNELS)
    p["readout_mlp_w2"] = w(keys[next(ki)], (MLP_HIDDEN, 1), MLP_HIDDEN)
    return p


def _block_diag4(w0, w1):
    """[4C,4C] block-diag(w0, w1, w1, w1) for the [l0|l1y|l1z|l1x] feature layout."""
    C = w0.shape[0]
    z = jnp.zeros((C, C), jnp.float32)
    return jnp.concatenate([
        jnp.concatenate([w0, z, z, z], axis=1),
        jnp.concatenate([z, w1, z, z], axis=1),
        jnp.concatenate([z, z, w1, z], axis=1),
        jnp.concatenate([z, z, z, w1], axis=1),
    ], axis=0)


def pack_params(params):
    """Pack per-irrep / per-element / per-layer weights into fused, feature-major
    (transposed) MXU operands."""
    wupT, wlinskipT, wr1_rows, wr2_blocks = [], [], [], []
    for lp in params["layers"]:
        wupT.append(_block_diag4(lp["wup0"], lp["wup1"]).T)                 # [4C, 4C]
        wlinT = _block_diag4(lp["wlin0"], lp["wlin1"]).T                    # [4C, 4C]
        wskipT = [_block_diag4(lp["wskip0"][z], lp["wskip1"][z]).T
                  for z in range(NUM_ELEMENTS)]                             # Z x [4C, 4C]
        wlinskipT.append(jnp.concatenate([wlinT] + wskipT, axis=1))         # [4C, 4C*(1+Z)]
        wr1_rows.append(lp["wr1"].T)                                        # [H, B]
        wr2_blocks.append(lp["wr2"].T)                                      # [4C, H]
    # radial MLP for both layers in one shot: vstack'd first layer, block-diag second
    wr1_all = jnp.concatenate(wr1_rows, axis=0)                             # [L*H, B]
    zH = jnp.zeros((FEAT_DIM, RADIAL_HIDDEN), jnp.float32)
    wr2_all = jnp.concatenate(
        [jnp.concatenate([wr2_blocks[t] if j == t else zH
                          for j in range(NUM_INTERACTIONS)], axis=1)
         for t in range(NUM_INTERACTIONS)], axis=0)                         # [L*4C, L*H]
    return {
        "wupT": jnp.stack(wupT),           # [L, 4C, 4C]
        "wlinskipT": jnp.stack(wlinskipT), # [L, 4C, 4C*(1+Z)]
        "wr1_all": wr1_all,                # [L*H, B]
        "wr2_all": wr2_all,                # [L*4C, L*H]
    }


# ------------------------------- forward pass --------------------------------
@partial(jax.jit, static_argnames=("num_graphs",))
def mace_forward(params, positions, node_attrs, edge_index, shifts, batch, num_graphs):
    N = positions.shape[0]
    E = edge_index.shape[1]
    sender, receiver = edge_index[0], edge_index[1]

    # glue: edge vectors (feature-major) + raw int32 indices; the one-hot
    # gather / scatter / pooling tiles are built inside the kernel.
    vectors = positions[receiver] - positions[sender] + shifts              # [E, 3]
    vec_fm = vectors.T                                                      # [3, E]
    attrs_fm = node_attrs.T                                                 # [Z, N]
    send_idx = sender.astype(jnp.int32).reshape(1, E)
    recv_idx = receiver.astype(jnp.int32).reshape(E, 1)
    batch_idx = batch.astype(jnp.int32).reshape(N, 1)

    packed = pack_params(params)

    args = [attrs_fm, vec_fm, send_idx, recv_idx, batch_idx,
            params["atomic_energies"].T, params["w_emb"].T,
            packed["wupT"], packed["wr1_all"], packed["wr2_all"], packed["wlinskipT"],
            params["readout_lin"].T, params["readout_mlp_w1"].T, params["readout_mlp_w2"].T]

    contrib_fm = pl.pallas_call(
        partial(mace_fused_kernel, num_graphs=num_graphs),
        grid=(1,),   # whole problem fits VMEM; tile over edges/nodes at scale
        in_specs=[_full_spec(a.shape) for a in args],
        out_specs=_full_spec((NUM_CONTRIB, num_graphs)),
        out_shape=jax.ShapeDtypeStruct((NUM_CONTRIB, num_graphs), jnp.float32),
        compiler_params=pltpu.CompilerParams(
            dimension_semantics=("arbitrary",),
            vmem_limit_bytes=32 * 1024 * 1024),
    )(*args)                                                                # [L+2, G]

    contributions = contrib_fm.T                                            # [G, L+2]
    total_energy = jnp.sum(contributions, axis=-1)                          # [G]

    # TODO(synk): forces = -d(total_energy)/d(positions) needs a custom_vjp
    #             through the fused Pallas kernel; returning zeros.
    forces = jnp.zeros_like(positions)

    return {"energy": total_energy, "contributions": contributions, "forces": forces}


# ---------------------------------- main -------------------------------------
if __name__ == "__main__":
    key = jax.random.PRNGKey(0)
    k_pos, k_elem, k_params = jax.random.split(key, 3)

    num_graphs = 2
    nodes_per_graph = 4
    N = num_graphs * nodes_per_graph

    # fully-connected (no self loops) edges within each graph
    edges = []
    for g in range(num_graphs):
        base = g * nodes_per_graph
        for a in range(nodes_per_graph):
            for b in range(nodes_per_graph):
                if a != b:
                    edges.append((base + a, base + b))
    edge_index = jnp.asarray(np.array(edges, dtype=np.int32).T)             # [2, E]
    E = edge_index.shape[1]

    positions = jax.random.normal(k_pos, (N, 3), dtype=jnp.float32) * 1.5
    shifts = jnp.zeros((E, 3), dtype=jnp.float32)
    elements = jax.random.randint(k_elem, (N,), 0, NUM_ELEMENTS)
    node_attrs = jax.nn.one_hot(elements, NUM_ELEMENTS, dtype=jnp.float32)
    batch = jnp.asarray(np.repeat(np.arange(num_graphs), nodes_per_graph).astype(np.int32))

    params = init_params(k_params)

    out = mace_forward(params, positions, node_attrs, edge_index, shifts, batch, num_graphs)
    jax.block_until_ready(out["energy"])
    jax.block_until_ready(out["contributions"])
    jax.block_until_ready(out["forces"])

    assert out["energy"].shape == (num_graphs,)
    assert out["contributions"].shape == (num_graphs, NUM_CONTRIB)
    assert out["forces"].shape == (N, 3)
    assert np.all(np.isfinite(np.asarray(out["energy"])))
    assert np.all(np.isfinite(np.asarray(out["contributions"])))
    print("KERNEL_OK")
</pallas_src>

<mosaic_0001>
module attributes {stable_mosaic.version = 11 : i64} {
  func.func @mace_fused_kernel(%arg0: i32, %arg1: memref<3x8xf32, #tpu.memory_space<vmem>>, %arg2: memref<3x24xf32, #tpu.memory_space<vmem>>, %arg3: memref<1x24xi32, #tpu.memory_space<vmem>>, %arg4: memref<24x1xi32, #tpu.memory_space<vmem>>, %arg5: memref<8x1xi32, #tpu.memory_space<vmem>>, %arg6: memref<1x3xf32, #tpu.memory_space<vmem>>, %arg7: memref<8x3xf32, #tpu.memory_space<vmem>>, %arg8: memref<2x32x32xf32, #tpu.memory_space<vmem>>, %arg9: memref<32x8xf32, #tpu.memory_space<vmem>>, %arg10: memref<64x32xf32, #tpu.memory_space<vmem>>, %arg11: memref<2x32x128xf32, #tpu.memory_space<vmem>>, %arg12: memref<1x8xf32, #tpu.memory_space<vmem>>, %arg13: memref<16x8xf32, #tpu.memory_space<vmem>>, %arg14: memref<1x16xf32, #tpu.memory_space<vmem>>, %arg15: memref<4x2xf32, #tpu.memory_space<vmem>>) attributes {dimension_semantics = [#tpu.dimension_semantics<arbitrary>], iteration_bounds = array<i64: 1>, scalar_prefetch = 0 : i64, scratch_operands = 0 : i64, tpu.core_type = #tpu.core_type<tc>, window_params = [{pipeline_mode = #tpu.pipeline_mode<synchronous>, transform_indices = @transform_0, window_bounds = array<i64: 3, 8>}, {pipeline_mode = #tpu.pipeline_mode<synchronous>, transform_indices = @transform_1, window_bounds = array<i64: 3, 24>}, {pipeline_mode = #tpu.pipeline_mode<synchronous>, transform_indices = @transform_2, window_bounds = array<i64: 1, 24>}, {pipeline_mode = #tpu.pipeline_mode<synchronous>, transform_indices = @transform_3, window_bounds = array<i64: 24, 1>}, {pipeline_mode = #tpu.pipeline_mode<synchronous>, transform_indices = @transform_4, window_bounds = array<i64: 8, 1>}, {pipeline_mode = #tpu.pipeline_mode<synchronous>, transform_indices = @transform_5, window_bounds = array<i64: 1, 3>}, {pipeline_mode = #tpu.pipeline_mode<synchronous>, transform_indices = @transform_6, window_bounds = array<i64: 8, 3>}, {pipeline_mode = #tpu.pipeline_mode<synchronous>, transform_indices = @transform_7, window_bounds = array<i64: 2, 32, 32>}, {pipeline_mode = #tpu.pipeline_mode<synchronous>, transform_indices = @transform_8, window_bounds = array<i64: 32, 8>}, {pipeline_mode = #tpu.pipeline_mode<synchronous>, transform_indices = @transform_9, window_bounds = array<i64: 64, 32>}, {pipeline_mode = #tpu.pipeline_mode<synchronous>, transform_indices = @transform_10, window_bounds = array<i64: 2, 32, 128>}, {pipeline_mode = #tpu.pipeline_mode<synchronous>, transform_indices = @transform_11, window_bounds = array<i64: 1, 8>}, {pipeline_mode = #tpu.pipeline_mode<synchronous>, transform_indices = @transform_12, window_bounds = array<i64: 16, 8>}, {pipeline_mode = #tpu.pipeline_mode<synchronous>, transform_indices = @transform_13, window_bounds = array<i64: 1, 16>}, {pipeline_mode = #tpu.pipeline_mode<synchronous>, transform_indices = @transform_14, window_bounds = array<i64: 4, 2>}]} {
    %c0 = arith.constant 0 : index
    %c0_0 = arith.constant 0 : index
    %0 = vector.load %arg1[%c0, %c0_0] : memref<3x8xf32, #tpu.memory_space<vmem>>, vector<3x8xf32>
    %c0_1 = arith.constant 0 : index
    %c0_2 = arith.constant 0 : index
    %1 = vector.load %arg2[%c0_1, %c0_2] : memref<3x24xf32, #tpu.memory_space<vmem>>, vector<3x24xf32>
    %2 = tpu.iota {dimensions = array<i32: 0>} : vector<8x24xi32>
    %c0_3 = arith.constant 0 : index
    %c0_4 = arith.constant 0 : index
    %3 = vector.load %arg3[%c0_3, %c0_4] : memref<1x24xi32, #tpu.memory_space<vmem>>, vector<1x24xi32>
    %4 = vector.broadcast %3 : vector<1x24xi32> to vector<8x24xi32>
    %5 = arith.cmpi eq, %2, %4 : vector<8x24xi32>
    %6 = arith.extui %5 : vector<8x24xi1> to vector<8x24xi32>
    %7 = arith.sitofp %6 : vector<8x24xi32> to vector<8x24xf32>
    %8 = tpu.iota {dimensions = array<i32: 1>} : vector<24x8xi32>
    %c0_5 = arith.constant 0 : index
    %c0_6 = arith.constant 0 : index
    %9 = vector.load %arg4[%c0_5, %c0_6] : memref<24x1xi32, #tpu.memory_space<vmem>>, vector<24x1xi32>
    %10 = vector.broadcast %9 : vector<24x1xi32> to vector<24x8xi32>
    %11 = arith.cmpi eq, %8, %10 : vector<24x8xi32>
    %12 = arith.extui %11 : vector<24x8xi1> to vector<24x8xi32>
    %13 = arith.sitofp %12 : vector<24x8xi32> to vector<24x8xf32>
    %14 = tpu.iota {dimensions = array<i32: 1>} : vector<8x2xi32>
    %c0_7 = arith.constant 0 : index
    %c0_8 = arith.constant 0 : index
    %15 = vector.load %arg5[%c0_7, %c0_8] : memref<8x1xi32, #tpu.memory_space<vmem>>, vector<8x1xi32>
    %16 = vector.broadcast %15 : vector<8x1xi32> to vector<8x2xi32>
    %17 = arith.cmpi eq, %14, %16 : vector<8x2xi32>
    %18 = arith.extui %17 : vector<8x2xi1> to vector<8x2xi32>
    %19 = arith.sitofp %18 : vector<8x2xi32> to vector<8x2xf32>
    %20 = vector.extract_strided_slice %1 {offsets = [0, 0], sizes = [1, 24], strides = [1, 1]} : vector<3x24xf32> to vector<1x24xf32>
    %21 = vector.extract_strided_slice %1 {offsets = [0, 0], sizes = [1, 24], strides = [1, 1]} : vector<3x24xf32> to vector<1x24xf32>
    %22 = arith.mulf %20, %21 : vector<1x24xf32>
    %23 = vector.extract_strided_slice %1 {offsets = [1, 0], sizes = [1, 24], strides = [1, 1]} : vector<3x24xf32> to vector<1x24xf32>
    %24 = vector.extract_strided_slice %1 {offsets = [1, 0], sizes = [1, 24], strides = [1, 1]} : vector<3x24xf32> to vector<1x24xf32>
    %25 = arith.mulf %23, %24 : vector<1x24xf32>
    %26 = arith.addf %22, %25 : vector<1x24xf32>
    %27 = vector.extract_strided_slice %1 {offsets = [2, 0], sizes = [1, 24], strides = [1, 1]} : vector<3x24xf32> to vector<1x24xf32>
    %28 = vector.extract_strided_slice %1 {offsets = [2, 0], sizes = [1, 24], strides = [1, 1]} : vector<3x24xf32> to vector<1x24xf32>
    %29 = arith.mulf %27, %28 : vector<1x24xf32>
    %30 = arith.addf %26, %29 : vector<1x24xf32>
    %cst = arith.constant 1.000000e-18 : f32
    %31 = vector.broadcast %cst : f32 to vector<1x24xf32>
    %32 = arith.maximumf %30, %31 : vector<1x24xf32>
    %33 = math.rsqrt %32 : vector<1x24xf32>
    %34 = arith.mulf %30, %33 : vector<1x24xf32>
    %35 = vector.broadcast %33 : vector<1x24xf32> to vector<3x24xf32>
    %36 = arith.mulf %1, %35 : vector<3x24xf32>
    %cst_9 = arith.constant 1.000000e+00 : f32
    %37 = vector.broadcast %cst_9 : f32 to vector<8x1xf32>
    %38 = vector.extract_strided_slice %36 {offsets = [1, 0], sizes = [1, 24], strides = [1, 1]} : vector<3x24xf32> to vector<1x24xf32>
    %cst_10 = arith.constant 1.73205078 : f32
    %39 = vector.broadcast %cst_10 : f32 to vector<1x24xf32>
    %40 = arith.mulf %39, %38 : vector<1x24xf32>
    %41 = vector.broadcast %37 : vector<8x1xf32> to vector<8x24xf32>
    %42 = vector.broadcast %40 : vector<1x24xf32> to vector<8x24xf32>
    %43 = arith.mulf %41, %42 : vector<8x24xf32>
    %44 = vector.extract_strided_slice %36 {offsets = [2, 0], sizes = [1, 24], strides = [1, 1]} : vector<3x24xf32> to vector<1x24xf32>
    %cst_11 = arith.constant 1.73205078 : f32
    %45 = vector.broadcast %cst_11 : f32 to vector<1x24xf32>
    %46 = arith.mulf %45, %44 : vector<1x24xf32>
    %47 = vector.broadcast %37 : vector<8x1xf32> to vector<8x24xf32>
    %48 = vector.broadcast %46 : vector<1x24xf32> to vector<8x24xf32>
    %49 = arith.mulf %47, %48 : vector<8x24xf32>
    %50 = vector.extract_strided_slice %36 {offsets = [0, 0], sizes = [1, 24], strides = [1, 1]} : vector<3x24xf32> to vector<1x24xf32>
    %cst_12 = arith.constant 1.73205078 : f32
    %51 = vector.broadcast %cst_12 : f32 to vector<1x24xf32>
    %52 = arith.mulf %51, %50 : vector<1x24xf32>
    %53 = vector.broadcast %37 : vector<8x1xf32> to vector<8x24xf32>
    %54 = vector.broadcast %52 : vector<1x24xf32> to vector<8x24xf32>
    %55 = arith.mulf %53, %54 : vector<8x24xf32>
    %56 = tpu.concatenate %43, %49, %55 in 0 : vector<8x24xf32>, vector<8x24xf32>, vector<8x24xf32> -> vector<24x24xf32>
    %57 = tpu.iota {dimensions = array<i32: 0>} : vector<8x1xi32>
    %c1_i32 = arith.constant 1 : i32
    %58 = vector.broadcast %c1_i32 : i32 to vector<8x1xi32>
    %59 = arith.addi %57, %58 : vector<8x1xi32>
    %60 = arith.sitofp %59 : vector<8x1xi32> to vector<8x1xf32>
    %cst_13 = arith.constant 0.628318548 : f32
    %61 = vector.broadcast %cst_13 : f32 to vector<8x1xf32>
    %62 = arith.mulf %60, %61 : vector<8x1xf32>
    %63 = vector.broadcast %62 : vector<8x1xf32> to vector<8x24xf32>
    %64 = vector.broadcast %34 : vector<1x24xf32> to vector<8x24xf32>
    %65 = arith.mulf %63, %64 : vector<8x24xf32>
    %66 = math.sin %65 : vector<8x24xf32>
    %cst_14 = arith.constant 0.632455527 : f32
    %67 = vector.broadcast %cst_14 : f32 to vector<8x24xf32>
    %68 = arith.mulf %67, %66 : vector<8x24xf32>
    %69 = vector.broadcast %33 : vector<1x24xf32> to vector<8x24xf32>
    %70 = arith.mulf %68, %69 : vector<8x24xf32>
    %cst_15 = arith.constant 2.000000e-01 : f32
    %71 = vector.broadcast %cst_15 : f32 to vector<1x24xf32>
    %72 = arith.mulf %34, %71 : vector<1x24xf32>
    %73 = arith.mulf %72, %72 : vector<1x24xf32>
    %74 = arith.mulf %73, %73 : vector<1x24xf32>
    %75 = arith.mulf %74, %72 : vector<1x24xf32>
    %76 = arith.mulf %75, %72 : vector<1x24xf32>
    %77 = arith.mulf %76, %72 : vector<1x24xf32>
    %cst_16 = arith.constant 2.100000e+01 : f32
    %78 = vector.broadcast %cst_16 : f32 to vector<1x24xf32>
    %79 = arith.mulf %78, %75 : vector<1x24xf32>
    %cst_17 = arith.constant 1.000000e+00 : f32
    %80 = vector.broadcast %cst_17 : f32 to vector<1x24xf32>
    %81 = arith.subf %80, %79 : vector<1x24xf32>
    %cst_18 = arith.constant 3.500000e+01 : f32
    %82 = vector.broadcast %cst_18 : f32 to vector<1x24xf32>
    %83 = arith.mulf %82, %76 : vector<1x24xf32>
    %84 = arith.addf %81, %83 : vector<1x24xf32>
    %cst_19 = arith.constant 1.500000e+01 : f32
    %85 = vector.broadcast %cst_19 : f32 to vector<1x24xf32>
    %86 = arith.mulf %85, %77 : vector<1x24xf32>
    %87 = arith.subf %84, %86 : vector<1x24xf32>
    %cst_20 = arith.constant 1.000000e+00 : f32
    %88 = vector.broadcast %cst_20 : f32 to vector<1x24xf32>
    %89 = arith.cmpf olt, %72, %88 : vector<1x24xf32>
    %cst_21 = arith.constant 1.000000e+00 : f32
    %cst_22 = arith.constant 0.000000e+00 : f32
    %90 = vector.broadcast %cst_21 : f32 to vector<1x24xf32>
    %91 = vector.broadcast %cst_22 : f32 to vector<1x24xf32>
    %92 = arith.select %89, %90, %91 : vector<1x24xi1>, vector<1x24xf32>
    %93 = arith.mulf %87, %92 : vector<1x24xf32>
    %cst_23 = arith.constant 9.99999996E-13 : f32
    %94 = vector.broadcast %cst_23 : f32 to vector<1x24xf32>
    %95 = arith.cmpf ogt, %30, %94 : vector<1x24xf32>
    %cst_24 = arith.constant 1.000000e+00 : f32
    %cst_25 = arith.constant 0.000000e+00 : f32
    %96 = vector.broadcast %cst_24 : f32 to vector<1x24xf32>
    %97 = vector.broadcast %cst_25 : f32 to vector<1x24xf32>
    %98 = arith.select %95, %96, %97 : vector<1x24xi1>, vector<1x24xf32>
    %99 = vector.broadcast %93 : vector<1x24xf32> to vector<8x24xf32>
    %100 = arith.mulf %70, %99 : vector<8x24xf32>
    %101 = vector.broadcast %98 : vector<1x24xf32> to vector<8x24xf32>
    %102 = arith.mulf %100, %101 : vector<8x24xf32>
    %c0_26 = arith.constant 0 : index
    %c0_27 = arith.constant 0 : index
    %103 = vector.load %arg10[%c0_26, %c0_27] : memref<64x32xf32, #tpu.memory_space<vmem>>, vector<64x32xf32>
    %c0_28 = arith.constant 0 : index
    %c0_29 = arith.constant 0 : index
    %104 = vector.load %arg9[%c0_28, %c0_29] : memref<32x8xf32, #tpu.memory_space<vmem>>, vector<32x8xf32>
    %cst_30 = arith.constant dense<0.000000e+00> : vector<32x24xf32>
    %105 = tpu.matmul %104, %102, %cst_30 {dimension_numbers = #tpu.dot_dimension_numbers<[1], [0], [0], [1], [0, 0, 1, 1], [], []>} : vector<32x8xf32>, vector<8x24xf32>, vector<32x24xf32> -> vector<32x24xf32>
    %cst_31 = arith.constant 0.000000e+00 : f32
    %106 = vector.broadcast %cst_31 : f32 to vector<32x24xf32>
    %107 = arith.subf %106, %105 : vector<32x24xf32>
    %108 = math.exp %107 : vector<32x24xf32>
    %cst_32 = arith.constant 1.000000e+00 : f32
    %109 = vector.broadcast %cst_32 : f32 to vector<32x24xf32>
    %110 = arith.addf %109, %108 : vector<32x24xf32>
    %cst_33 = arith.constant 1.000000e+00 : f32
    %111 = vector.broadcast %cst_33 : f32 to vector<32x24xf32>
    %112 = arith.divf %111, %110 : vector<32x24xf32>
    %113 = arith.mulf %105, %112 : vector<32x24xf32>
    %cst_34 = arith.constant dense<0.000000e+00> : vector<64x24xf32>
    %114 = tpu.matmul %103, %113, %cst_34 {dimension_numbers = #tpu.dot_dimension_numbers<[1], [0], [0], [1], [0, 0, 1, 1], [], []>} : vector<64x32xf32>, vector<32x24xf32>, vector<64x24xf32> -> vector<64x24xf32>
    %c0_35 = arith.constant 0 : index
    %c0_36 = arith.constant 0 : index
    %115 = vector.load %arg7[%c0_35, %c0_36] : memref<8x3xf32, #tpu.memory_space<vmem>>, vector<8x3xf32>
    %cst_37 = arith.constant dense<0.000000e+00> : vector<8x8xf32>
    %116 = tpu.matmul %115, %0, %cst_37 {dimension_numbers = #tpu.dot_dimension_numbers<[1], [0], [0], [1], [0, 0, 1, 1], [], []>} : vector<8x3xf32>, vector<3x8xf32>, vector<8x8xf32> -> vector<8x8xf32>
    %cst_38 = arith.constant 0.000000e+00 : f32
    %117 = vector.broadcast %cst_38 : f32 to vector<24x8xf32>
    %118 = tpu.concatenate %116, %117 in 0 : vector<8x8xf32>, vector<24x8xf32> -> vector<32x8xf32>
    %c0_39 = arith.constant 0 : index
    %c0_40 = arith.constant 0 : index
    %119 = vector.load %arg6[%c0_39, %c0_40] : memref<1x3xf32, #tpu.memory_space<vmem>>, vector<1x3xf32>
    %cst_41 = arith.constant dense<0.000000e+00> : vector<1x8xf32>
    %120 = tpu.matmul %119, %0, %cst_41 {dimension_numbers = #tpu.dot_dimension_numbers<[1], [0], [0], [1], [0, 0, 1, 1], [], []>} : vector<1x3xf32>, vector<3x8xf32>, vector<1x8xf32> -> vector<1x8xf32>
    %cst_42 = arith.constant 0.000000e+00 : f32
    %121 = vector.broadcast %cst_42 : f32 to vector<1x8xf32>
    %c0_43 = arith.constant 0 : index
    %c0_44 = arith.constant 0 : index
    %c0_45 = arith.constant 0 : index
    %122 = vector.load %arg8[%c0_43, %c0_44, %c0_45] : memref<2x32x32xf32, #tpu.memory_space<vmem>>, vector<1x32x32xf32>
    %123 = vector.shape_cast %122 : vector<1x32x32xf32> to vector<32x32xf32>
    %c0_46 = arith.constant 0 : index
    %c0_47 = arith.constant 0 : index
    %c0_48 = arith.constant 0 : index
    %124 = vector.load %arg11[%c0_46, %c0_47, %c0_48] : memref<2x32x128xf32, #tpu.memory_space<vmem>>, vector<1x32x128xf32>
    %125 = vector.shape_cast %124 : vector<1x32x128xf32> to vector<32x128xf32>
    %cst_49 = arith.constant dense<0.000000e+00> : vector<32x8xf32>
    %126 = tpu.matmul %123, %118, %cst_49 {dimension_numbers = #tpu.dot_dimension_numbers<[1], [0], [0], [1], [0, 0, 1, 1], [], []>} : vector<32x32xf32>, vector<32x8xf32>, vector<32x8xf32> -> vector<32x8xf32>
    %cst_50 = arith.constant dense<0.000000e+00> : vector<32x24xf32>
    %127 = tpu.matmul %126, %7, %cst_50 {dimension_numbers = #tpu.dot_dimension_numbers<[1], [0], [0], [1], [0, 0, 1, 1], [], []>} : vector<32x8xf32>, vector<8x24xf32>, vector<32x24xf32> -> vector<32x24xf32>
    %128 = vector.extract_strided_slice %114 {offsets = [0, 0], sizes = [32, 24], strides = [1, 1]} : vector<64x24xf32> to vector<32x24xf32>
    %129 = vector.extract_strided_slice %127 {offsets = [0, 0], sizes = [8, 24], strides = [1, 1]} : vector<32x24xf32> to vector<8x24xf32>
    %130 = vector.extract_strided_slice %127 {offsets = [8, 0], sizes = [24, 24], strides = [1, 1]} : vector<32x24xf32> to vector<24x24xf32>
    %131 = vector.extract_strided_slice %128 {offsets = [0, 0], sizes = [8, 24], strides = [1, 1]} : vector<32x24xf32> to vector<8x24xf32>
    %132 = vector.extract_strided_slice %128 {offsets = [8, 0], sizes = [8, 24], strides = [1, 1]} : vector<32x24xf32> to vector<8x24xf32>
    %133 = vector.extract_strided_slice %128 {offsets = [16, 0], sizes = [8, 24], strides = [1, 1]} : vector<32x24xf32> to vector<8x24xf32>
    %134 = vector.extract_strided_slice %128 {offsets = [24, 0], sizes = [8, 24], strides = [1, 1]} : vector<32x24xf32> to vector<8x24xf32>
    %135 = arith.mulf %130, %56 : vector<24x24xf32>
    %136 = vector.extract_strided_slice %135 {offsets = [0, 0], sizes = [8, 24], strides = [1, 1]} : vector<24x24xf32> to vector<8x24xf32>
    %137 = vector.extract_strided_slice %135 {offsets = [8, 0], sizes = [8, 24], strides = [1, 1]} : vector<24x24xf32> to vector<8x24xf32>
    %138 = arith.addf %136, %137 : vector<8x24xf32>
    %139 = vector.extract_strided_slice %135 {offsets = [16, 0], sizes = [8, 24], strides = [1, 1]} : vector<24x24xf32> to vector<8x24xf32>
    %140 = arith.addf %138, %139 : vector<8x24xf32>
    %141 = arith.mulf %131, %129 : vector<8x24xf32>
    %cst_51 = arith.constant 0.577350259 : f32
    %142 = vector.broadcast %cst_51 : f32 to vector<8x24xf32>
    %143 = arith.mulf %142, %140 : vector<8x24xf32>
    %144 = arith.mulf %134, %143 : vector<8x24xf32>
    %145 = arith.addf %141, %144 : vector<8x24xf32>
    %146 = arith.mulf %132, %129 : vector<8x24xf32>
    %147 = tpu.concatenate %146, %146, %146 in 0 : vector<8x24xf32>, vector<8x24xf32>, vector<8x24xf32> -> vector<24x24xf32>
    %148 = arith.mulf %147, %56 : vector<24x24xf32>
    %149 = tpu.concatenate %133, %133, %133 in 0 : vector<8x24xf32>, vector<8x24xf32>, vector<8x24xf32> -> vector<24x24xf32>
    %150 = arith.mulf %149, %130 : vector<24x24xf32>
    %151 = arith.addf %148, %150 : vector<24x24xf32>
    %152 = tpu.concatenate %145, %151 in 0 : vector<8x24xf32>, vector<24x24xf32> -> vector<32x24xf32>
    %cst_52 = arith.constant dense<0.000000e+00> : vector<32x8xf32>
    %153 = tpu.matmul %152, %13, %cst_52 {dimension_numbers = #tpu.dot_dimension_numbers<[1], [0], [0], [1], [0, 0, 1, 1], [], []>} : vector<32x24xf32>, vector<24x8xf32>, vector<32x8xf32> -> vector<32x8xf32>
    %cst_53 = arith.constant 0.333333343 : f32
    %154 = vector.broadcast %cst_53 : f32 to vector<32x8xf32>
    %155 = arith.mulf %153, %154 : vector<32x8xf32>
    %156 = vector.extract_strided_slice %0 {offsets = [0, 0], sizes = [1, 8], strides = [1, 1]} : vector<3x8xf32> to vector<1x8xf32>
    %157 = vector.broadcast %156 : vector<1x8xf32> to vector<32x8xf32>
    %158 = arith.mulf %157, %118 : vector<32x8xf32>
    %159 = vector.extract_strided_slice %0 {offsets = [1, 0], sizes = [1, 8], strides = [1, 1]} : vector<3x8xf32> to vector<1x8xf32>
    %160 = vector.broadcast %159 : vector<1x8xf32> to vector<32x8xf32>
    %161 = arith.mulf %160, %118 : vector<32x8xf32>
    %162 = vector.extract_strided_slice %0 {offsets = [2, 0], sizes = [1, 8], strides = [1, 1]} : vector<3x8xf32> to vector<1x8xf32>
    %163 = vector.broadcast %162 : vector<1x8xf32> to vector<32x8xf32>
    %164 = arith.mulf %163, %118 : vector<32x8xf32>
    %165 = tpu.concatenate %155, %158, %161, %164 in 0 : vector<32x8xf32>, vector<32x8xf32>, vector<32x8xf32>, vector<32x8xf32> -> vector<128x8xf32>
    %cst_54 = arith.constant dense<0.000000e+00> : vector<32x8xf32>
    %166 = tpu.matmul %125, %165, %cst_54 {dimension_numbers = #tpu.dot_dimension_numbers<[1], [0], [0], [1], [0, 0, 1, 1], [], []>} : vector<32x128xf32>, vector<128x8xf32>, vector<32x8xf32> -> vector<32x8xf32>
    %c0_55 = arith.constant 0 : index
    %c0_56 = arith.constant 0 : index
    %167 = vector.load %arg12[%c0_55, %c0_56] : memref<1x8xf32, #tpu.memory_space<vmem>>, vector<1x8xf32>
    %168 = vector.extract_strided_slice %166 {offsets = [0, 0], sizes = [8, 8], strides = [1, 1]} : vector<32x8xf32> to vector<8x8xf32>
    %cst_57 = arith.constant dense<0.000000e+00> : vector<1x8xf32>
    %169 = tpu.matmul %167, %168, %cst_57 {dimension_numbers = #tpu.dot_dimension_numbers<[1], [0], [0], [1], [0, 0, 1, 1], [], []>} : vector<1x8xf32>, vector<8x8xf32>, vector<1x8xf32> -> vector<1x8xf32>
    %c1 = arith.constant 1 : index
    %c0_58 = arith.constant 0 : index
    %c0_59 = arith.constant 0 : index
    %170 = vector.load %arg8[%c1, %c0_58, %c0_59] : memref<2x32x32xf32, #tpu.memory_space<vmem>>, vector<1x32x32xf32>
    %171 = vector.shape_cast %170 : vector<1x32x32xf32> to vector<32x32xf32>
    %c1_60 = arith.constant 1 : index
    %c0_61 = arith.constant 0 : index
    %c0_62 = arith.constant 0 : index
    %172 = vector.load %arg11[%c1_60, %c0_61, %c0_62] : memref<2x32x128xf32, #tpu.memory_space<vmem>>, vector<1x32x128xf32>
    %173 = vector.shape_cast %172 : vector<1x32x128xf32> to vector<32x128xf32>
    %cst_63 = arith.constant dense<0.000000e+00> : vector<32x8xf32>
    %174 = tpu.matmul %171, %166, %cst_63 {dimension_numbers = #tpu.dot_dimension_numbers<[1], [0], [0], [1], [0, 0, 1, 1], [], []>} : vector<32x32xf32>, vector<32x8xf32>, vector<32x8xf32> -> vector<32x8xf32>
    %cst_64 = arith.constant dense<0.000000e+00> : vector<32x24xf32>
    %175 = tpu.matmul %174, %7, %cst_64 {dimension_numbers = #tpu.dot_dimension_numbers<[1], [0], [0], [1], [0, 0, 1, 1], [], []>} : vector<32x8xf32>, vector<8x24xf32>, vector<32x24xf32> -> vector<32x24xf32>
    %176 = vector.extract_strided_slice %114 {offsets = [32, 0], sizes = [32, 24], strides = [1, 1]} : vector<64x24xf32> to vector<32x24xf32>
    %177 = vector.extract_strided_slice %175 {offsets = [0, 0], sizes = [8, 24], strides = [1, 1]} : vector<32x24xf32> to vector<8x24xf32>
    %178 = vector.extract_strided_slice %175 {offsets = [8, 0], sizes = [24, 24], strides = [1, 1]} : vector<32x24xf32> to vector<24x24xf32>
    %179 = vector.extract_strided_slice %176 {offsets = [0, 0], sizes = [8, 24], strides = [1, 1]} : vector<32x24xf32> to vector<8x24xf32>
    %180 = vector.extract_strided_slice %176 {offsets = [8, 0], sizes = [8, 24], strides = [1, 1]} : vector<32x24xf32> to vector<8x24xf32>
    %181 = vector.extract_strided_slice %176 {offsets = [16, 0], sizes = [8, 24], strides = [1, 1]} : vector<32x24xf32> to vector<8x24xf32>
    %182 = vector.extract_strided_slice %176 {offsets = [24, 0], sizes = [8, 24], strides = [1, 1]} : vector<32x24xf32> to vector<8x24xf32>
    %183 = arith.mulf %178, %56 : vector<24x24xf32>
    %184 = vector.extract_strided_slice %183 {offsets = [0, 0], sizes = [8, 24], strides = [1, 1]} : vector<24x24xf32> to vector<8x24xf32>
    %185 = vector.extract_strided_slice %183 {offsets = [8, 0], sizes = [8, 24], strides = [1, 1]} : vector<24x24xf32> to vector<8x24xf32>
    %186 = arith.addf %184, %185 : vector<8x24xf32>
    %187 = vector.extract_strided_slice %183 {offsets = [16, 0], sizes = [8, 24], strides = [1, 1]} : vector<24x24xf32> to vector<8x24xf32>
    %188 = arith.addf %186, %187 : vector<8x24xf32>
    %189 = arith.mulf %179, %177 : vector<8x24xf32>
    %cst_65 = arith.constant 0.577350259 : f32
    %190 = vector.broadcast %cst_65 : f32 to vector<8x24xf32>
    %191 = arith.mulf %190, %188 : vector<8x24xf32>
    %192 = arith.mulf %182, %191 : vector<8x24xf32>
    %193 = arith.addf %189, %192 : vector<8x24xf32>
    %194 = arith.mulf %180, %177 : vector<8x24xf32>
    %195 = tpu.concatenate %194, %194, %194 in 0 : vector<8x24xf32>, vector<8x24xf32>, vector<8x24xf32> -> vector<24x24xf32>
    %196 = arith.mulf %195, %56 : vector<24x24xf32>
    %197 = tpu.concatenate %181, %181, %181 in 0 : vector<8x24xf32>, vector<8x24xf32>, vector<8x24xf32> -> vector<24x24xf32>
    %198 = arith.mulf %197, %178 : vector<24x24xf32>
    %199 = arith.addf %196, %198 : vector<24x24xf32>
    %200 = tpu.concatenate %193, %199 in 0 : vector<8x24xf32>, vector<24x24xf32> -> vector<32x24xf32>
    %cst_66 = arith.constant dense<0.000000e+00> : vector<32x8xf32>
    %201 = tpu.matmul %200, %13, %cst_66 {dimension_numbers = #tpu.dot_dimension_numbers<[1], [0], [0], [1], [0, 0, 1, 1], [], []>} : vector<32x24xf32>, vector<24x8xf32>, vector<32x8xf32> -> vector<32x8xf32>
    %cst_67 = arith.constant 0.333333343 : f32
    %202 = vector.broadcast %cst_67 : f32 to vector<32x8xf32>
    %203 = arith.mulf %201, %202 : vector<32x8xf32>
    %204 = vector.extract_strided_slice %0 {offsets = [0, 0], sizes = [1, 8], strides = [1, 1]} : vector<3x8xf32> to vector<1x8xf32>
    %205 = vector.broadcast %204 : vector<1x8xf32> to vector<32x8xf32>
    %206 = arith.mulf %205, %166 : vector<32x8xf32>
    %207 = vector.extract_strided_slice %0 {offsets = [1, 0], sizes = [1, 8], strides = [1, 1]} : vector<3x8xf32> to vector<1x8xf32>
    %208 = vector.broadcast %207 : vector<1x8xf32> to vector<32x8xf32>
    %209 = arith.mulf %208, %166 : vector<32x8xf32>
    %210 = vector.extract_strided_slice %0 {offsets = [2, 0], sizes = [1, 8], strides = [1, 1]} : vector<3x8xf32> to vector<1x8xf32>
    %211 = vector.broadcast %210 : vector<1x8xf32> to vector<32x8xf32>
    %212 = arith.mulf %211, %166 : vector<32x8xf32>
    %213 = tpu.concatenate %203, %206, %209, %212 in 0 : vector<32x8xf32>, vector<32x8xf32>, vector<32x8xf32>, vector<32x8xf32> -> vector<128x8xf32>
    %cst_68 = arith.constant dense<0.000000e+00> : vector<32x8xf32>
    %214 = tpu.matmul %173, %213, %cst_68 {dimension_numbers = #tpu.dot_dimension_numbers<[1], [0], [0], [1], [0, 0, 1, 1], [], []>} : vector<32x128xf32>, vector<128x8xf32>, vector<32x8xf32> -> vector<32x8xf32>
    %c0_69 = arith.constant 0 : index
    %c0_70 = arith.constant 0 : index
    %215 = vector.load %arg14[%c0_69, %c0_70] : memref<1x16xf32, #tpu.memory_space<vmem>>, vector<1x16xf32>
    %c0_71 = arith.constant 0 : index
    %c0_72 = arith.constant 0 : index
    %216 = vector.load %arg13[%c0_71, %c0_72] : memref<16x8xf32, #tpu.memory_space<vmem>>, vector<16x8xf32>
    %217 = vector.extract_strided_slice %214 {offsets = [0, 0], sizes = [8, 8], strides = [1, 1]} : vector<32x8xf32> to vector<8x8xf32>
    %cst_73 = arith.constant dense<0.000000e+00> : vector<16x8xf32>
    %218 = tpu.matmul %216, %217, %cst_73 {dimension_numbers = #tpu.dot_dimension_numbers<[1], [0], [0], [1], [0, 0, 1, 1], [], []>} : vector<16x8xf32>, vector<8x8xf32>, vector<16x8xf32> -> vector<16x8xf32>
    %cst_74 = arith.constant 0.000000e+00 : f32
    %219 = vector.broadcast %cst_74 : f32 to vector<16x8xf32>
    %220 = arith.subf %219, %218 : vector<16x8xf32>
    %221 = math.exp %220 : vector<16x8xf32>
    %cst_75 = arith.constant 1.000000e+00 : f32
    %222 = vector.broadcast %cst_75 : f32 to vector<16x8xf32>
    %223 = arith.addf %222, %221 : vector<16x8xf32>
    %cst_76 = arith.constant 1.000000e+00 : f32
    %224 = vector.broadcast %cst_76 : f32 to vector<16x8xf32>
    %225 = arith.divf %224, %223 : vector<16x8xf32>
    %226 = arith.mulf %218, %225 : vector<16x8xf32>
    %cst_77 = arith.constant dense<0.000000e+00> : vector<1x8xf32>
    %227 = tpu.matmul %215, %226, %cst_77 {dimension_numbers = #tpu.dot_dimension_numbers<[1], [0], [0], [1], [0, 0, 1, 1], [], []>} : vector<1x16xf32>, vector<16x8xf32>, vector<1x8xf32> -> vector<1x8xf32>
    %228 = tpu.concatenate %120, %121, %169, %227 in 0 : vector<1x8xf32>, vector<1x8xf32>, vector<1x8xf32>, vector<1x8xf32> -> vector<4x8xf32>
    %cst_78 = arith.constant dense<0.000000e+00> : vector<4x2xf32>
    %229 = tpu.matmul %228, %19, %cst_78 {dimension_numbers = #tpu.dot_dimension_numbers<[1], [0], [0], [1], [0, 0, 1, 1], [], []>} : vector<4x8xf32>, vector<8x2xf32>, vector<4x2xf32> -> vector<4x2xf32>
    %c0_79 = arith.constant 0 : index
    %c0_80 = arith.constant 0 : index
    %230 = vector.load %arg15[%c0_79, %c0_80] : memref<4x2xf32, #tpu.memory_space<vmem>>, vector<4x2xf32>
    tpu.vector_store %arg15[%c0_79, %c0_80], %229 {strides = array<i32>} : memref<4x2xf32, #tpu.memory_space<vmem>>, vector<4x2xf32>,
    return
  }
  func.func @transform_0(%arg0: i32) -> (i32, i32) {
    %c0_i32 = arith.constant 0 : i32
    %c0_i32_0 = arith.constant 0 : i32
    %c0_i32_1 = arith.constant 0 : i32
    return %c0_i32, %c0_i32_0 : i32, i32
  }
  func.func @transform_1(%arg0: i32) -> (i32, i32) {
    %c0_i32 = arith.constant 0 : i32
    %c0_i32_0 = arith.constant 0 : i32
    %c0_i32_1 = arith.constant 0 : i32
    return %c0_i32, %c0_i32_0 : i32, i32
  }
  func.func @transform_2(%arg0: i32) -> (i32, i32) {
    %c0_i32 = arith.constant 0 : i32
    %c0_i32_0 = arith.constant 0 : i32
    %c0_i32_1 = arith.constant 0 : i32
    return %c0_i32, %c0_i32_0 : i32, i32
  }
  func.func @transform_3(%arg0: i32) -> (i32, i32) {
    %c0_i32 = arith.constant 0 : i32
    %c0_i32_0 = arith.constant 0 : i32
    %c0_i32_1 = arith.constant 0 : i32
    return %c0_i32, %c0_i32_0 : i32, i32
  }
  func.func @transform_4(%arg0: i32) -> (i32, i32) {
    %c0_i32 = arith.constant 0 : i32
    %c0_i32_0 = arith.constant 0 : i32
    %c0_i32_1 = arith.constant 0 : i32
    return %c0_i32, %c0_i32_0 : i32, i32
  }
  func.func @transform_5(%arg0: i32) -> (i32, i32) {
    %c0_i32 = arith.constant 0 : i32
    %c0_i32_0 = arith.constant 0 : i32
    %c0_i32_1 = arith.constant 0 : i32
    return %c0_i32, %c0_i32_0 : i32, i32
  }
  func.func @transform_6(%arg0: i32) -> (i32, i32) {
    %c0_i32 = arith.constant 0 : i32
    %c0_i32_0 = arith.constant 0 : i32
    %c0_i32_1 = arith.constant 0 : i32
    return %c0_i32, %c0_i32_0 : i32, i32
  }
  func.func @transform_7(%arg0: i32) -> (i32, i32, i32) {
    %c0_i32 = arith.constant 0 : i32
    %c0_i32_0 = arith.constant 0 : i32
    %c0_i32_1 = arith.constant 0 : i32
    %c0_i32_2 = arith.constant 0 : i32
    return %c0_i32, %c0_i32_0, %c0_i32_1 : i32, i32, i32
  }
  func.func @transform_8(%arg0: i32) -> (i32, i32) {
    %c0_i32 = arith.constant 0 : i32
    %c0_i32_0 = arith.constant 0 : i32
    %c0_i32_1 = arith.constant 0 : i32
    return %c0_i32, %c0_i32_0 : i32, i32
  }
  func.func @transform_9(%arg0: i32) -> (i32, i32) {
    %c0_i32 = arith.constant 0 : i32
    %c0_i32_0 = arith.constant 0 : i32
    %c0_i32_1 = arith.constant 0 : i32
    return %c0_i32, %c0_i32_0 : i32, i32
  }
  func.func @transform_10(%arg0: i32) -> (i32, i32, i32) {
    %c0_i32 = arith.constant 0 : i32
    %c0_i32_0 = arith.constant 0 : i32
    %c0_i32_1 = arith.constant 0 : i32
    %c0_i32_2 = arith.constant 0 : i32
    return %c0_i32, %c0_i32_0, %c0_i32_1 : i32, i32, i32
  }
  func.func @transform_11(%arg0: i32) -> (i32, i32) {
    %c0_i32 = arith.constant 0 : i32
    %c0_i32_0 = arith.constant 0 : i32
    %c0_i32_1 = arith.constant 0 : i32
    return %c0_i32, %c0_i32_0 : i32, i32
  }
  func.func @transform_12(%arg0: i32) -> (i32, i32) {
    %c0_i32 = arith.constant 0 : i32
    %c0_i32_0 = arith.constant 0 : i32
    %c0_i32_1 = arith.constant 0 : i32
    return %c0_i32, %c0_i32_0 : i32, i32
  }
  func.func @transform_13(%arg0: i32) -> (i32, i32) {
    %c0_i32 = arith.constant 0 : i32
    %c0_i32_0 = arith.constant 0 : i32
    %c0_i32_1 = arith.constant 0 : i32
    return %c0_i32, %c0_i32_0 : i32, i32
  }
  func.func @transform_14(%arg0: i32) -> (i32, i32) {
    %c0_i32 = arith.constant 0 : i32
    %c0_i32_0 = arith.constant 0 : i32
    %c0_i32_1 = arith.constant 0 : i32
    return %c0_i32, %c0_i32_0 : i32, i32
  }
}

</mosaic_0001>

<llo_original>
// kernel: mace_forward.1
$region0: #{mace_forward.1}
  #allocation0 [shape = 'u32[]', space=smem, size = 0x4, offset = 0x4, fixed_abs, tag = 'smem constant byte address 0x4 - core index']
  #allocation1 [shape = 'u32[144,128]{1,0:T(1,128)}', space=vmem, size = 0x12000, scoped, tag = 'internal scratch']
  %s0 = inlined_call_operand.vmem [shape: f32[3,8], index: 0, kind: input, shape index: {}]
  %s1 = inlined_call_operand.vmem [shape: f32[3,24], index: 1, kind: input, shape index: {}]
  %s2 = inlined_call_operand.vmem [shape: s32[1,24], index: 2, kind: input, shape index: {}]
  %s3 = inlined_call_operand.vmem [shape: s32[24,1], index: 3, kind: input, shape index: {}]
  %s4 = inlined_call_operand.vmem [shape: s32[8,1], index: 4, kind: input, shape index: {}]
  %s5 = inlined_call_operand.vmem [shape: f32[1,3], index: 5, kind: input, shape index: {}]
  %s6 = inlined_call_operand.vmem [shape: f32[8,3], index: 6, kind: input, shape index: {}]
  %s7 = inlined_call_operand.vmem [shape: f32[2,32,32], index: 7, kind: input, shape index: {}]
  %s8 = inlined_call_operand.vmem [shape: f32[32,8], index: 8, kind: input, shape index: {}]
  %s9 = inlined_call_operand.vmem [shape: f32[64,32], index: 9, kind: input, shape index: {}]
  %s10 = inlined_call_operand.vmem [shape: f32[2,32,128], index: 10, kind: input, shape index: {}]
  %s11 = inlined_call_operand.vmem [shape: f32[1,8], index: 11, kind: input, shape index: {}]
  %s12 = inlined_call_operand.vmem [shape: f32[16,8], index: 12, kind: input, shape index: {}]
  %s13 = inlined_call_operand.vmem [shape: f32[1,16], index: 13, kind: input, shape index: {}]
  %s14 = inlined_call_operand.vmem [shape: f32[4,2], index: 14, kind: output, shape index: {}]
  %s15 = sld [smem:[#allocation0]]
  $region66: #{mace_forward.1} parent=0
    _
  %s17 = ssub.s32 1, %s15
  %s18 = scalar_select 0, %s17, %s15
  // Predicated region
  $region2: #{mace_forward.1} parent=0 // pred_check
    _
  $region3: #{mace_forward.1} parent=0 // pred_check_branch
    %20 = sbr.rel (0) target = $region5
  $region4: #{mace_forward.1} parent=0 // pred_region
    _
  $region5: #{mace_forward.1} parent=0 // pred_fallthru
    _
  // Predicated region
  $region6: #{mace_forward.1} parent=0 // pred_check
    _
  $region7: #{mace_forward.1} parent=0 // pred_check_branch
    %22 = sbr.rel (0) target = $region9
  $region8: #{mace_forward.1} parent=0 // pred_region
    _
  $region9: #{mace_forward.1} parent=0 // pred_fallthru
    _
  // Predicated region
  $region10: #{mace_forward.1} parent=0 // pred_check
    _
  $region11: #{mace_forward.1} parent=0 // pred_check_branch
    %24 = sbr.rel (0) target = $region13
  $region12: #{mace_forward.1} parent=0 // pred_region
    _
  $region13: #{mace_forward.1} parent=0 // pred_fallthru
    _
  // Predicated region
  $region14: #{mace_forward.1} parent=0 // pred_check
    _
  $region15: #{mace_forward.1} parent=0 // pred_check_branch
    %26 = sbr.rel (0) target = $region17
  $region16: #{mace_forward.1} parent=0 // pred_region
    _
  $region17: #{mace_forward.1} parent=0 // pred_fallthru
    _
  // Predicated region
  $region18: #{mace_forward.1} parent=0 // pred_check
    _
  $region19: #{mace_forward.1} parent=0 // pred_check_branch
    %28 = sbr.rel (0) target = $region21
  $region20: #{mace_forward.1} parent=0 // pred_region
    _
  $region21: #{mace_forward.1} parent=0 // pred_fallthru
    _
  // Predicated region
  $region22: #{mace_forward.1} parent=0 // pred_check
    _
  $region23: #{mace_forward.1} parent=0 // pred_check_branch
    %30 = sbr.rel (0) target = $region25
  $region24: #{mace_forward.1} parent=0 // pred_region
    _
  $region25: #{mace_forward.1} parent=0 // pred_fallthru
    _
  // Predicated region
  $region26: #{mace_forward.1} parent=0 // pred_check
    _
  $region27: #{mace_forward.1} parent=0 // pred_check_branch
    %32 = sbr.rel (0) target = $region29
  $region28: #{mace_forward.1} parent=0 // pred_region
    _
  $region29: #{mace_forward.1} parent=0 // pred_fallthru
    _
  // Predicated region
  $region30: #{mace_forward.1} parent=0 // pred_check
    _
  $region31: #{mace_forward.1} parent=0 // pred_check_branch
    %34 = sbr.rel (0) target = $region33
  $region32: #{mace_forward.1} parent=0 // pred_region
    _
  $region33: #{mace_forward.1} parent=0 // pred_fallthru
    _
  // Predicated region
  $region34: #{mace_forward.1} parent=0 // pred_check
    _
  $region35: #{mace_forward.1} parent=0 // pred_check_branch
    %36 = sbr.rel (0) target = $region37
  $region36: #{mace_forward.1} parent=0 // pred_region
    _
  $region37: #{mace_forward.1} parent=0 // pred_fallthru
    _
  // Predicated region
  $region38: #{mace_forward.1} parent=0 // pred_check
    _
  $region39: #{mace_forward.1} parent=0 // pred_check_branch
    %38 = sbr.rel (0) target = $region41
  $region40: #{mace_forward.1} parent=0 // pred_region
    _
  $region41: #{mace_forward.1} parent=0 // pred_fallthru
    _
  // Predicated region
  $region42: #{mace_forward.1} parent=0 // pred_check
    _
  $region43: #{mace_forward.1} parent=0 // pred_check_branch
    %40 = sbr.rel (0) target = $region45
  $region44: #{mace_forward.1} parent=0 // pred_region
    _
  $region45: #{mace_forward.1} parent=0 // pred_fallthru
    _
  // Predicated region
  $region46: #{mace_forward.1} parent=0 // pred_check
    _
  $region47: #{mace_forward.1} parent=0 // pred_check_branch
    %42 = sbr.rel (0) target = $region49
  $region48: #{mace_forward.1} parent=0 // pred_region
    _
  $region49: #{mace_forward.1} parent=0 // pred_fallthru
    _
  // Predicated region
  $region50: #{mace_forward.1} parent=0 // pred_check
    _
  $region51: #{mace_forward.1} parent=0 // pred_check_branch
    %44 = sbr.rel (0) target = $region53
  $region52: #{mace_forward.1} parent=0 // pred_region
    _
  $region53: #{mace_forward.1} parent=0 // pred_fallthru
    _
  // Predicated region
  $region54: #{mace_forward.1} parent=0 // pred_check
    _
  $region55: #{mace_forward.1} parent=0 // pred_check_branch
    %46 = sbr.rel (0) target = $region57
  $region56: #{mace_forward.1} parent=0 // pred_region
    _
  $region57: #{mace_forward.1} parent=0 // pred_fallthru
    _
  %v47 = vld [vmem:[%s0] sm:$0x7]
  %v48 = vld [vmem:[%s1] sm:$0x7]
  %v49 = vlaneseq
  %v50 = vshrl.u32 %v49, 7
  %v51 = vld [vmem:[%s2] sm:$0x1]
  %v52 = vlaneseq
  %v53 = vshrl.u32 %v52, 7
  %v54 = vsub.s32 0, %v53
  %v55 = vrot.slane %v51, %v54
  %vm56 = vcmp.eq.s32.totalorder %v50, %v55
  %v57 = vsel %vm56, 1, 0
  %v58 = vcvt.s32.f32 %v57
  %v59 = vlaneseq
  %v60 = vand.u32 %v59, 127
  %v61 = vld [vmem:[%s3] sm:$0xff]
  %v62 = vld [vmem:[%s3 + $0x8] sm:$0xff]
  %v63 = vld [vmem:[%s3 + $0x10] sm:$0xff]
  %64 = vset.pattern.permute.xlu0 0
  %65 = vperm.xlu0 %64, %v61
  %v66 = vpop.permute.xlu0 %65
  %67 = vset.pattern.permute.xlu0 0
  %68 = vperm.xlu0 %67, %v62
  %v69 = vpop.permute.xlu0 %68
  %70 = vset.pattern.permute.xlu0 0
  %71 = vperm.xlu0 %70, %v63
  %v72 = vpop.permute.xlu0 %71
  %vm73 = vcmp.eq.s32.totalorder %v60, %v66
  %vm74 = vcmp.eq.s32.totalorder %v60, %v69
  %vm75 = vcmp.eq.s32.totalorder %v60, %v72
  %v76 = vsel %vm73, 1, 0
  %v77 = vsel %vm74, 1, 0
  %v78 = vsel %vm75, 1, 0
  %v79 = vcvt.s32.f32 %v76
  %v80 = vcvt.s32.f32 %v77
  %v81 = vcvt.s32.f32 %v78
  %v82 = vld [vmem:[%s4] sm:$0xff]
  %83 = vset.pattern.permute.xlu0 0
  %84 = vperm.xlu0 %83, %v82
  %v85 = vpop.permute.xlu0 %84
  %vm86 = vcmp.eq.s32.totalorder %v60, %v85
  %v87 = vsel %vm86, 1, 0
  %v88 = vcvt.s32.f32 %v87
  %v89 = vmul.f32 %v48, %v48
  %v91 = vrot.slane %v89, 1
  %v93 = vadd.f32 %v89, %v91
  %v94 = vrot.slane %v89, 2
  %v96 = vadd.f32 %v93, %v94
  %v97 = vmax.f32 %v96, 1e-18
  %v98 = vrsqrt.pop %v97
  %v99 = vmul.f32 %v96, %v98
  %v100 = vlaneseq
  %v101 = vshrl.u32 %v100, 7
  %v102 = vsub.s32 0, %v101
  %v103 = vrot.slane %v98, %v102
  %v104 = vmul.f32 %v48, %v103
  %v105 = vmul.f32 %v104, 1.7320508
  %v106 = vlaneseq
  %v107 = vshrl.u32 %v106, 7
  %v108 = vsub.s32 1, %v107
  %v109 = vrot.slane %v105, %v108
  %v110 = vlaneseq
  %v111 = vshrl.u32 %v110, 7
  %v112 = vsub.s32 2, %v111
  %v113 = vrot.slane %v105, %v112
  %v114 = vlaneseq
  %v115 = vshrl.u32 %v114, 7
  %v116 = vsub.s32 0, %v115
  %v117 = vrot.slane %v105, %v116
  %v118 = vadd.s32 %v50, 1
  %v119 = vcvt.s32.f32 %v118
  %v120 = vmul.f32 %v119, 0.62831855
  %v121 = vlaneseq
  %v122 = vshrl.u32 %v121, 7
  %v123 = vsub.s32 0, %v122
  %v124 = vrot.slane %v99, %v123
  %v125 = vmul.f32 %v120, %v124
  %v126 = vand.u32 2147483647, %v125
  %vm127 = vcmp.le.f32.partialorder %v126, 0.7853982
  %vm128 = vcmp.lt.s32.totalorder %v125, 0
  %v129 = vand.u32 %v125, 2139095040
  %v130 = vshrl.u32 %v129, 23
  %v131 = vsub.s32 %v130, 127
  %v132 = vand.u32 2147483647, %v125
  %v133 = vand.u32 %v132, 8388607
  %v134 = vor.u32 %v133, 8388608
  %v135 = vsub.s32 0, %v134
  %v136 = vadd.s32 %v131, 1
  %vm137 = vcmp.gt.s32.totalorder %v136, 0
  %v138 = vsel %vm137, %v136, 0
  %v139 = vshrl.u32 %v138, 5
  %v140 = vand.u32 %v138, 31
  %v141 = vsub.s32 32, %v140
  %v142 = vshrl.u32 683565275, %v141
  %v143 = vshll.u32 683565275, %v140
  %v144 = vshrl.u32 2475754826, %v141
  %v145 = vor.u32 %v143, %v144
  %v146 = vshll.u32 2475754826, %v140
  %v147 = vshrl.u32 2131351028, %v141
  %v148 = vor.u32 %v146, %v147
  %v149 = vshll.u32 2131351028, %v140
  %v150 = vshrl.u32 2102212464, %v141
  %v151 = vor.u32 %v149, %v150
  %v152 = vshll.u32 2102212464, %v140
  %v153 = vshrl.u32 920167782, %v141
  %v154 = vor.u32 %v152, %v153
  %v155 = vshll.u32 920167782, %v140
  %v156 = vshrl.u32 1326507024, %v141
  %v157 = vor.u32 %v155, %v156
  %vm158 = vcmp.lt.s32.totalorder %v139, 1
  %vm159 = vcmp.lt.s32.totalorder %v139, 2
  %vm160 = vcmp.lt.s32.totalorder %v139, 3
  %vm161 = vcmp.lt.s32.totalorder %v139, 4
  %v162 = vsel %vm158, %v142, %v145
  %v163 = vsel %vm161, %v151, 2102212464
  %v164 = vsel %vm160, %v148, %v163
  %v165 = vsel %vm159, %v162, %v164
  %v166 = vsel %vm158, %v145, %v148
  %v167 = vsel %vm161, %v154, 920167782
  %v168 = vsel %vm160, %v151, %v167
  %v169 = vsel %vm159, %v166, %v168
  %v170 = vsel %vm158, %v148, %v151
  %v171 = vsel %vm161, %v157, 1326507024
  %v172 = vsel %vm160, %v154, %v171
  %v173 = vsel %vm159, %v170, %v172
  %v174 = vshll.u32 %v134, 8
  %v175 = vmul.u32.u64.compose %v174, %v173
  %v176 = vextract.low.u32 %v175
  %v177 = vextract.high.u32 %v175
  %v178 = vmul.u32.u64.compose %v174, %v169
  %v179 = vextract.low.u32 %v178
  %v180 = vextract.high.u32 %v178
  %v181 = vmul.u32 %v174, %v165
  %v182 = vadd.s32 %v177, %v179
  %vm183 = vc.u32 %v177, %v179
  %v184 = vadd.s32 %v180, 1
  %v185 = vsel %vm183, %v184, %v180
  %v186 = vadd.s32 %v181, %v185
  %v187 = vadd.s32 %v186, 536870912
  %v188 = vshrl.u32 %v187, 30
  %v189 = vshll.u32 %v188, 30
  %v190 = vsub.s32 %v186, %v189
  %vm191 = vcmp.lt.s32.totalorder %v190, 0
  %v192 = vsub.s32 0, %v190
  %v193 = vsel %vm191, %v192, %v190
  %v194 = vclz %v193
  %v195 = vsub.s32 %v194, 2
  %vm196 = vcmp.gt.s32.totalorder 0, %v195
  %v197 = vsel %vm196, 0, %v195
  %v198 = vsub.s32 32, %v197
  %v199 = vshll.u32 %v190, %v197
  %v200 = vshrl.u32 %v182, %v198
  %v201 = vor.u32 %v199, %v200
  %v202 = vsub.s32 4294967266, %v197
  %v203 = vadd.s32 %v202, 127
  %v204 = vshll.u32 %v203, 23
  %v205 = vor.u32 4788187, %v204
  %v206 = vand.u32 2147483647, %v205
  %v208 = vcvt.s32.f32 %v201
  %v209 = vmul.f32 %v208, %v206
  %v210 = vxor.u32 %v209, 2147483648
  %v211 = vsel %vm128, %v210, %v209
  %v212 = vsub.s32 4, %v188
  %v213 = vsel %vm128, %v212, %v188
  %v214 = vsel %vm127, %v125, %v211
  %v215 = vsel %vm127, 0, %v213
  %v216 = vcosq.f32.pop %v214
  %v217 = vsinq.f32.pop %v214
  %vm218 = vweird.f32 %v125
  %v219 = vadd.s32 %v215, 3
  %v220 = vand.u32 %v219, 3
  %vm221 = vcmp.lt.s32.totalorder %v220, 2
  %vm222 = vcmp.eq.s32.totalorder %v220, 0
  %v223 = vxor.u32 %v217, 2147483648
  %v224 = vsel %vm222, %v216, %v223
  %vm225 = vcmp.eq.s32.totalorder %v220, 2
  %v226 = vxor.u32 %v216, 2147483648
  %v227 = vsel %vm225, %v226, %v217
  %v228 = vsel %vm221, %v224, %v227
  %v229 = vsel %vm218, nan, %v228
  %v230 = vmul.f32 %v229, 0.6324555
  %v231 = vmul.f32 %v230, %v103
  %v232 = vmul.f32 %v99, 0.2
  %v233 = vmul.f32 %v232, %v232
  %v234 = vmul.f32 %v233, %v233
  %v235 = vmul.f32 %v234, %v232
  %v236 = vmul.f32 %v235, %v232
  %v237 = vmul.f32 %v236, %v232
  %v238 = vmul.f32 %v235, 21.0
  %v239 = vsub.f32 1.0, %v238
  %v240 = vmul.f32 %v236, 35.0
  %v241 = vadd.f32 %v239, %v240
  %v242 = vmul.f32 %v237, 15.0
  %v243 = vsub.f32 %v241, %v242
  %vm244 = vcmp.lt.f32.partialorder %v232, 1.0
  %v245 = vsel %vm244, 1.0, 0.0
  %v246 = vmul.f32 %v243, %v245
  %vm247 = vcmp.gt.f32.partialorder %v96, 1e-12
  %v248 = vsel %vm247, 1.0, 0.0
  %v249 = vlaneseq
  %v250 = vshrl.u32 %v249, 7
  %v251 = vsub.s32 0, %v250
  %v252 = vrot.slane %v246, %v251
  %v253 = vmul.f32 %v231, %v252
  %v254 = vlaneseq
  %v255 = vshrl.u32 %v254, 7
  %v256 = vsub.s32 0, %v255
  %v257 = vrot.slane %v248, %v256
  %v258 = vmul.f32 %v253, %v257
  %v259 = vld [vmem:[%s9] sm:$0xff]
  %v260 = vld [vmem:[%s9 + $0x8] sm:$0xff]
  %v261 = vld [vmem:[%s9 + $0x10] sm:$0xff]
  %v262 = vld [vmem:[%s9 + $0x18] sm:$0xff]
  %v263 = vld [vmem:[%s9 + $0x20] sm:$0xff]
  %v264 = vld [vmem:[%s9 + $0x28] sm:$0xff]
  %v265 = vld [vmem:[%s9 + $0x30] sm:$0xff]
  %v266 = vld [vmem:[%s9 + $0x38] sm:$0xff]
  %v267 = vld [vmem:[%s8] sm:$0xff]
  %v268 = vld [vmem:[%s8 + $0x8] sm:$0xff]
  %v269 = vld [vmem:[%s8 + $0x10] sm:$0xff]
  %v270 = vld [vmem:[%s8 + $0x18] sm:$0xff]
  %vm271 = vcmask 64512
  %v273 = vsel %vm271, %v267, 0
  %v276 = vsel %vm271, %v268, 0
  %v279 = vsel %vm271, %v269, 0
  %v282 = vsel %vm271, %v270, 0
  %284 = vmatprep.subr.mxu0 0.0
  %285 = vmatpush1.msra.mxu0 %v258
  %286 = vmatprep.subr.mxu0 0.0
  %287 = vmatpush1.msra.mxu0 0.0
  %288 = vmatprep.subr.mxu0 0.0
  %289 = vmatpush1.msra.mxu0 0.0
  %290 = vmatprep.subr.mxu0 0.0
  %291 = vmatpush1.msra.mxu0 0.0
  %292 = vmatprep.subr.mxu0 0.0
  %293 = vmatpush1.msra.mxu0 0.0
  %294 = vmatprep.subr.mxu0 0.0
  %295 = vmatpush1.msra.mxu0 0.0
  %296 = vmatprep.subr.mxu0 0.0
  %297 = vmatpush1.msra.mxu0 0.0
  %298 = vmatprep.subr.mxu0 0.0
  %299 = vmatpush1.msra.mxu0 0.0
  %300 = vmatprep.subr.mxu0 0.0
  %301 = vmatpush1.msra.mxu0 0.0
  %302 = vmatprep.subr.mxu0 0.0
  %303 = vmatpush1.msra.mxu0 0.0
  %304 = vmatprep.subr.mxu0 0.0
  %305 = vmatpush1.msra.mxu0 0.0
  %306 = vmatprep.subr.mxu0 0.0
  %307 = vmatpush1.msra.mxu0 0.0
  %308 = vmatprep.subr.mxu0 0.0
  %309 = vmatpush1.msra.mxu0 0.0
  %310 = vmatprep.subr.mxu0 0.0
  %311 = vmatpush1.msra.mxu0 0.0
  %312 = vmatprep.subr.mxu0 0.0
  %313 = vmatpush1.msra.mxu0 0.0
  %314 = vmatprep.subr.mxu0 0.0
  %315 = vmatpush1.msra.mxu0 0.0
  %316 = vmatprep.subr.mxu0 0.0
  %317 = vmatpush1.msra.mxu0 0.0
  %318 = vmatprep.subr.mxu0 0.0
  %319 = vmatpush1.msra.mxu0 0.0
  %320 = vmatprep.subr.mxu0 0.0
  %321 = vmatpush1.msra.mxu0 0.0
  %322 = vmatprep.subr.mxu0 0.0
  %323 = vmatpush1.msra.mxu0 0.0
  %324 = vmatprep.subr.mxu0 0.0
  %325 = vmatpush1.msra.mxu0 0.0
  %326 = vmatprep.subr.mxu0 0.0
  %327 = vmatpush1.msra.mxu0 0.0
  %328 = vmatprep.subr.mxu0 0.0
  %329 = vmatpush1.msra.mxu0 0.0
  %330 = vmatprep.subr.mxu0 0.0
  %331 = vmatpush1.msra.mxu0 0.0
  %332 = vmatprep.subr.mxu0 0.0
  %333 = vmatpush1.msra.mxu0 0.0
  %334 = vmatprep.subr.mxu0 0.0
  %335 = vmatpush1.msra.mxu0 0.0
  %336 = vmatprep.subr.mxu0 0.0
  %337 = vmatpush1.msra.mxu0 0.0
  %338 = vmatprep.subr.mxu0 0.0
  %339 = vmatpush1.msra.mxu0 0.0
  %340 = vmatprep.subr.mxu0 0.0
  %341 = vmatpush1.msra.mxu0 0.0
  %342 = vmatprep.subr.mxu0 0.0
  %343 = vmatpush1.msra.mxu0 0.0
  %344 = vmatprep.subr.mxu0 0.0
  %345 = vmatpush1.msra.mxu0 0.0
  %346 = vmatprep.subr.mxu0 0.0
  %347 = vmatpush1.msra.mxu0 0.0
  %348 = vmatprep.mubr.f32.mxu0 0.0
  %349 = vmatmul.mubr.f32.gmra.mrb[0].mxu0 %v273
  %v350 = vpop.f32.mrb[0].mxu0
  %v351 = vadd.f32 0.0, %v350
  %v352 = vpop.f32.mrb[0].mxu0
  %353 = vmatprep.mubr.f32.mxu0 0.0
  %354 = vmatmul.mubr.f32.gmra.mrb[0].mxu0 %v276
  %v355 = vpop.f32.mrb[0].mxu0
  %v356 = vadd.f32 0.0, %v355
  %v357 = vpop.f32.mrb[0].mxu0
  %358 = vmatprep.mubr.f32.mxu0 0.0
  %359 = vmatmul.mubr.f32.gmra.mrb[0].mxu0 %v279
  %v360 = vpop.f32.mrb[0].mxu0
  %v361 = vadd.f32 0.0, %v360
  %v362 = vpop.f32.mrb[0].mxu0
  %363 = vmatprep.mubr.f32.mxu0 0.0
  %364 = vmatmul.mubr.f32.gmra.mrb[0].mxu0 %v282
  %v365 = vpop.f32.mrb[0].mxu0
  %v366 = vadd.f32 0.0, %v365
  %v367 = vpop.f32.mrb[0].mxu0
  %368 = vdwg.mxu0
  %v369 = vsub.f32 0.0, %v351
  %v370 = vsub.f32 0.0, %v356
  %v371 = vsub.f32 0.0, %v361
  %v372 = vsub.f32 0.0, %v366
  %v373 = vmul.f32 %v369, 1.442695
  %v374 = vpow.pop %v373
  %v375 = vmul.f32 %v370, 1.442695
  %v376 = vpow.pop %v375
  %v377 = vmul.f32 %v371, 1.442695
  %v378 = vpow.pop %v377
  %v379 = vmul.f32 %v372, 1.442695
  %v380 = vpow.pop %v379
  %v381 = vadd.f32 %v374, 1.0
  %v382 = vadd.f32 %v376, 1.0
  %v383 = vadd.f32 %v378, 1.0
  %v384 = vadd.f32 %v380, 1.0
  %v385 = vrcp.pop %v381
  %v386 = vmul.f32 1.0, %v385
  %v387 = vrcp.pop %v382
  %v388 = vmul.f32 1.0, %v387
  %v389 = vrcp.pop %v383
  %v390 = vmul.f32 1.0, %v389
  %v391 = vrcp.pop %v384
  %v392 = vmul.f32 1.0, %v391
  %v393 = vmul.f32 %v351, %v386
  %v394 = vmul.f32 %v356, %v388
  %v395 = vmul.f32 %v361, %v390
  %v396 = vmul.f32 %v366, %v392
  %vm397 = vcmask 261120
  %v399 = vsel %vm397, %v259, 0
  %v402 = vsel %vm397, %v260, 0
  %v405 = vsel %vm397, %v261, 0
  %v408 = vsel %vm397, %v262, 0
  %v411 = vsel %vm397, %v263, 0
  %v414 = vsel %vm397, %v264, 0
  %v417 = vsel %vm397, %v265, 0
  %v420 = vsel %vm397, %v266, 0
  %422 = vmatprep.subr.mxu0 0.0
  %423 = vmatpush1.msra.mxu0 %v393
  %424 = vmatprep.subr.mxu0 0.0
  %425 = vmatpush1.msra.mxu0 %v394
  %426 = vmatprep.subr.mxu0 0.0
  %427 = vmatpush1.msra.mxu0 %v395
  %428 = vmatprep.subr.mxu0 0.0
  %429 = vmatpush1.msra.mxu0 %v396
  %430 = vmatprep.subr.mxu0 0.0
  %431 = vmatpush1.msra.mxu0 0.0
  %432 = vmatprep.subr.mxu0 0.0
  %433 = vmatpush1.msra.mxu0 0.0
  %434 = vmatprep.subr.mxu0 0.0
  %435 = vmatpush1.msra.mxu0 0.0
  %436 = vmatprep.subr.mxu0 0.0
  %437 = vmatpush1.msra.mxu0 0.0
  %438 = vmatprep.subr.mxu0 0.0
  %439 = vmatpush1.msra.mxu0 0.0
  %440 = vmatprep.subr.mxu0 0.0
  %441 = vmatpush1.msra.mxu0 0.0
  %442 = vmatprep.subr.mxu0 0.0
  %443 = vmatpush1.msra.mxu0 0.0
  %444 = vmatprep.subr.mxu0 0.0
  %445 = vmatpush1.msra.mxu0 0.0
  %446 = vmatprep.subr.mxu0 0.0
  %447 = vmatpush1.msra.mxu0 0.0
  %448 = vmatprep.subr.mxu0 0.0
  %449 = vmatpush1.msra.mxu0 0.0
  %450 = vmatprep.subr.mxu0 0.0
  %451 = vmatpush1.msra.mxu0 0.0
  %452 = vmatprep.subr.mxu0 0.0
  %453 = vmatpush1.msra.mxu0 0.0
  %454 = vmatprep.subr.mxu0 0.0
  %455 = vmatpush1.msra.mxu0 0.0
  %456 = vmatprep.subr.mxu0 0.0
  %457 = vmatpush1.msra.mxu0 0.0
  %458 = vmatprep.subr.mxu0 0.0
  %459 = vmatpush1.msra.mxu0 0.0
  %460 = vmatprep.subr.mxu0 0.0
  %461 = vmatpush1.msra.mxu0 0.0
  %462 = vmatprep.subr.mxu0 0.0
  %463 = vmatpush1.msra.mxu0 0.0
  %464 = vmatprep.subr.mxu0 0.0
  %465 = vmatpush1.msra.mxu0 0.0
  %466 = vmatprep.subr.mxu0 0.0
  %467 = vmatpush1.msra.mxu0 0.0
  %468 = vmatprep.subr.mxu0 0.0
  %469 = vmatpush1.msra.mxu0 0.0
  %470 = vmatprep.subr.mxu0 0.0
  %471 = vmatpush1.msra.mxu0 0.0
  %472 = vmatprep.subr.mxu0 0.0
  %473 = vmatpush1.msra.mxu0 0.0
  %474 = vmatprep.subr.mxu0 0.0
  %475 = vmatpush1.msra.mxu0 0.0
  %476 = vmatprep.subr.mxu0 0.0
  %477 = vmatpush1.msra.mxu0 0.0
  %478 = vmatprep.subr.mxu0 0.0
  %479 = vmatpush1.msra.mxu0 0.0
  %480 = vmatprep.subr.mxu0 0.0
  %481 = vmatpush1.msra.mxu0 0.0
  %482 = vmatprep.subr.mxu0 0.0
  %483 = vmatpush1.msra.mxu0 0.0
  %484 = vmatprep.subr.mxu0 0.0
  %485 = vmatpush1.msra.mxu0 0.0
  %486 = vmatprep.mubr.f32.mxu0 0.0
  %487 = vmatmul.mubr.f32.gmra.mrb[0].mxu0 %v399
  %v488 = vpop.f32.mrb[0].mxu0
  %v489 = vadd.f32 0.0, %v488
  %v490 = vpop.f32.mrb[0].mxu0
  %491 = vmatprep.mubr.f32.mxu0 0.0
  %492 = vmatmul.mubr.f32.gmra.mrb[0].mxu0 %v402
  %v493 = vpop.f32.mrb[0].mxu0
  %v494 = vadd.f32 0.0, %v493
  %v495 = vpop.f32.mrb[0].mxu0
  %496 = vmatprep.mubr.f32.mxu0 0.0
  %497 = vmatmul.mubr.f32.gmra.mrb[0].mxu0 %v405
  %v498 = vpop.f32.mrb[0].mxu0
  %v499 = vadd.f32 0.0, %v498
  %v500 = vpop.f32.mrb[0].mxu0
  %501 = vmatprep.mubr.f32.mxu0 0.0
  %502 = vmatmul.mubr.f32.gmra.mrb[0].mxu0 %v408
  %v503 = vpop.f32.mrb[0].mxu0
  %v504 = vadd.f32 0.0, %v503
  %v505 = vpop.f32.mrb[0].mxu0
  %506 = vmatprep.mubr.f32.mxu0 0.0
  %507 = vmatmul.mubr.f32.gmra.mrb[0].mxu0 %v411
  %v508 = vpop.f32.mrb[0].mxu0
  %v509 = vadd.f32 0.0, %v508
  %v510 = vpop.f32.mrb[0].mxu0
  %511 = vmatprep.mubr.f32.mxu0 0.0
  %512 = vmatmul.mubr.f32.gmra.mrb[0].mxu0 %v414
  %v513 = vpop.f32.mrb[0].mxu0
  %v514 = vadd.f32 0.0, %v513
  %v515 = vpop.f32.mrb[0].mxu0
  %516 = vmatprep.mubr.f32.mxu0 0.0
  %517 = vmatmul.mubr.f32.gmra.mrb[0].mxu0 %v417
  %v518 = vpop.f32.mrb[0].mxu0
  %v519 = vadd.f32 0.0, %v518
  %v520 = vpop.f32.mrb[0].mxu0
  %521 = vmatprep.mubr.f32.mxu0 0.0
  %522 = vmatmul.mubr.f32.gmra.mrb[0].mxu0 %v420
  %v523 = vpop.f32.mrb[0].mxu0
  %v524 = vadd.f32 0.0, %v523
  %v525 = vpop.f32.mrb[0].mxu0
  %526 = vdwg.mxu0
  %v527 = vld [vmem:[%s6] sm:$0xff]
  %vm528 = vcmask 23552
  %v530 = vsel %vm528, %v527, 0
  %vm532 = vcmask 1042432
  %v534 = vsel %vm532, %v47, 0
  %536 = vmatprep.subr.mxu0 0.0
  %537 = vmatpush1.msra.mxu0 %v534
  %538 = vmatprep.subr.mxu0 0.0
  %539 = vmatpush1.msra.mxu0 0.0
  %540 = vmatprep.subr.mxu0 0.0
  %541 = vmatpush1.msra.mxu0 0.0
  %542 = vmatprep.subr.mxu0 0.0
  %543 = vmatpush1.msra.mxu0 0.0
  %544 = vmatprep.subr.mxu0 0.0
  %545 = vmatpush1.msra.mxu0 0.0
  %546 = vmatprep.subr.mxu0 0.0
  %547 = vmatpush1.msra.mxu0 0.0
  %548 = vmatprep.subr.mxu0 0.0
  %549 = vmatpush1.msra.mxu0 0.0
  %550 = vmatprep.subr.mxu0 0.0
  %551 = vmatpush1.msra.mxu0 0.0
  %552 = vmatprep.subr.mxu0 0.0
  %553 = vmatpush1.msra.mxu0 0.0
  %554 = vmatprep.subr.mxu0 0.0
  %555 = vmatpush1.msra.mxu0 0.0
  %556 = vmatprep.subr.mxu0 0.0
  %557 = vmatpush1.msra.mxu0 0.0
  %558 = vmatprep.subr.mxu0 0.0
  %559 = vmatpush1.msra.mxu0 0.0
  %560 = vmatprep.subr.mxu0 0.0
  %561 = vmatpush1.msra.mxu0 0.0
  %562 = vmatprep.subr.mxu0 0.0
  %563 = vmatpush1.msra.mxu0 0.0
  %564 = vmatprep.subr.mxu0 0.0
  %565 = vmatpush1.msra.mxu0 0.0
  %566 = vmatprep.subr.mxu0 0.0
  %567 = vmatpush1.msra.mxu0 0.0
  %568 = vmatprep.subr.mxu0 0.0
  %569 = vmatpush1.msra.mxu0 0.0
  %570 = vmatprep.subr.mxu0 0.0
  %571 = vmatpush1.msra.mxu0 0.0
  %572 = vmatprep.subr.mxu0 0.0
  %573 = vmatpush1.msra.mxu0 0.0
  %574 = vmatprep.subr.mxu0 0.0
  %575 = vmatpush1.msra.mxu0 0.0
  %576 = vmatprep.subr.mxu0 0.0
  %577 = vmatpush1.msra.mxu0 0.0
  %578 = vmatprep.subr.mxu0 0.0
  %579 = vmatpush1.msra.mxu0 0.0
  %580 = vmatprep.subr.mxu0 0.0
  %581 = vmatpush1.msra.mxu0 0.0
  %582 = vmatprep.subr.mxu0 0.0
  %583 = vmatpush1.msra.mxu0 0.0
  %584 = vmatprep.subr.mxu0 0.0
  %585 = vmatpush1.msra.mxu0 0.0
  %586 = vmatprep.subr.mxu0 0.0
  %587 = vmatpush1.msra.mxu0 0.0
  %588 = vmatprep.subr.mxu0 0.0
  %589 = vmatpush1.msra.mxu0 0.0
  %590 = vmatprep.subr.mxu0 0.0
  %591 = vmatpush1.msra.mxu0 0.0
  %592 = vmatprep.subr.mxu0 0.0
  %593 = vmatpush1.msra.mxu0 0.0
  %594 = vmatprep.subr.mxu0 0.0
  %595 = vmatpush1.msra.mxu0 0.0
  %596 = vmatprep.subr.mxu0 0.0
  %597 = vmatpush1.msra.mxu0 0.0
  %598 = vmatprep.subr.mxu0 0.0
  %599 = vmatpush1.msra.mxu0 0.0
  %600 = vmatprep.mubr.f32.mxu0 0.0
  %601 = vmatmul.mubr.f32.gmra.mrb[0].mxu0 %v530
  %v602 = vpop.f32.mrb[0].mxu0
  %v603 = vadd.f32 0.0, %v602
  %v604 = vpop.f32.mrb[0].mxu0
  %605 = vdwg.mxu0
  %v606 = vld [vmem:[%s5] sm:$0x1]
  %v608 = vsel %vm528, %v606, 0
  %610 = vmatprep.subr.mxu0 0.0
  %611 = vmatpush1.msra.mxu0 %v534
  %612 = vmatprep.subr.mxu0 0.0
  %613 = vmatpush1.msra.mxu0 0.0
  %614 = vmatprep.subr.mxu0 0.0
  %615 = vmatpush1.msra.mxu0 0.0
  %616 = vmatprep.subr.mxu0 0.0
  %617 = vmatpush1.msra.mxu0 0.0
  %618 = vmatprep.subr.mxu0 0.0
  %619 = vmatpush1.msra.mxu0 0.0
  %620 = vmatprep.subr.mxu0 0.0
  %621 = vmatpush1.msra.mxu0 0.0
  %622 = vmatprep.subr.mxu0 0.0
  %623 = vmatpush1.msra.mxu0 0.0
  %624 = vmatprep.subr.mxu0 0.0
  %625 = vmatpush1.msra.mxu0 0.0
  %626 = vmatprep.subr.mxu0 0.0
  %627 = vmatpush1.msra.mxu0 0.0
  %628 = vmatprep.subr.mxu0 0.0
  %629 = vmatpush1.msra.mxu0 0.0
  %630 = vmatprep.subr.mxu0 0.0
  %631 = vmatpush1.msra.mxu0 0.0
  %632 = vmatprep.subr.mxu0 0.0
  %633 = vmatpush1.msra.mxu0 0.0
  %634 = vmatprep.subr.mxu0 0.0
  %635 = vmatpush1.msra.mxu0 0.0
  %636 = vmatprep.subr.mxu0 0.0
  %637 = vmatpush1.msra.mxu0 0.0
  %638 = vmatprep.subr.mxu0 0.0
  %639 = vmatpush1.msra.mxu0 0.0
  %640 = vmatprep.subr.mxu0 0.0
  %641 = vmatpush1.msra.mxu0 0.0
  %642 = vmatprep.subr.mxu0 0.0
  %643 = vmatpush1.msra.mxu0 0.0
  %644 = vmatprep.subr.mxu0 0.0
  %645 = vmatpush1.msra.mxu0 0.0
  %646 = vmatprep.subr.mxu0 0.0
  %647 = vmatpush1.msra.mxu0 0.0
  %648 = vmatprep.subr.mxu0 0.0
  %649 = vmatpush1.msra.mxu0 0.0
  %650 = vmatprep.subr.mxu0 0.0
  %651 = vmatpush1.msra.mxu0 0.0
  %652 = vmatprep.subr.mxu0 0.0
  %653 = vmatpush1.msra.mxu0 0.0
  %654 = vmatprep.subr.mxu0 0.0
  %655 = vmatpush1.msra.mxu0 0.0
  %656 = vmatprep.subr.mxu0 0.0
  %657 = vmatpush1.msra.mxu0 0.0
  %658 = vmatprep.subr.mxu0 0.0
  %659 = vmatpush1.msra.mxu0 0.0
  %660 = vmatprep.subr.mxu0 0.0
  %661 = vmatpush1.msra.mxu0 0.0
  %662 = vmatprep.subr.mxu0 0.0
  %663 = vmatpush1.msra.mxu0 0.0
  %664 = vmatprep.subr.mxu0 0.0
  %665 = vmatpush1.msra.mxu0 0.0
  %666 = vmatprep.subr.mxu0 0.0
  %667 = vmatpush1.msra.mxu0 0.0
  %668 = vmatprep.subr.mxu0 0.0
  %669 = vmatpush1.msra.mxu0 0.0
  %670 = vmatprep.subr.mxu0 0.0
  %671 = vmatpush1.msra.mxu0 0.0
  %672 = vmatprep.subr.mxu0 0.0
  %673 = vmatpush1.msra.mxu0 0.0
  %674 = vmatprep.mubr.f32.mxu0 0.0
  %675 = vmatmul.mubr.f32.gmra.mrb[0].mxu0 %v608
  %v676 = vpop.f32.mrb[0].mxu0
  %v677 = vadd.f32 0.0, %v676
  %v678 = vpop.f32.mrb[0].mxu0
  %679 = vdwg.mxu0
  %v680 = vld [vmem:[%s7] sm:$0xff]
  %v681 = vld [vmem:[%s7 + $0x8] sm:$0xff]
  %v682 = vld [vmem:[%s7 + $0x10] sm:$0xff]
  %v683 = vld [vmem:[%s7 + $0x18] sm:$0xff]
  %v684 = vld [vmem:[%s10] sm:$0xff]
  %v685 = vld [vmem:[%s10 + $0x8] sm:$0xff]
  %v686 = vld [vmem:[%s10 + $0x10] sm:$0xff]
  %v687 = vld [vmem:[%s10 + $0x18] sm:$0xff]
  %v689 = vsel %vm397, %v680, 0
  %v692 = vsel %vm397, %v681, 0
  %v695 = vsel %vm397, %v682, 0
  %v698 = vsel %vm397, %v683, 0
  %700 = vmatprep.subr.mxu0 0.0
  %701 = vmatpush1.msra.mxu0 %v603
  %702 = vmatprep.subr.mxu0 0.0
  %703 = vmatpush1.msra.mxu0 0.0
  %704 = vmatprep.subr.mxu0 0.0
  %705 = vmatpush1.msra.mxu0 0.0
  %706 = vmatprep.subr.mxu0 0.0
  %707 = vmatpush1.msra.mxu0 0.0
  %708 = vmatprep.subr.mxu0 0.0
  %709 = vmatpush1.msra.mxu0 0.0
  %710 = vmatprep.subr.mxu0 0.0
  %711 = vmatpush1.msra.mxu0 0.0
  %712 = vmatprep.subr.mxu0 0.0
  %713 = vmatpush1.msra.mxu0 0.0
  %714 = vmatprep.subr.mxu0 0.0
  %715 = vmatpush1.msra.mxu0 0.0
  %716 = vmatprep.subr.mxu0 0.0
  %717 = vmatpush1.msra.mxu0 0.0
  %718 = vmatprep.subr.mxu0 0.0
  %719 = vmatpush1.msra.mxu0 0.0
  %720 = vmatprep.subr.mxu0 0.0
  %721 = vmatpush1.msra.mxu0 0.0
  %722 = vmatprep.subr.mxu0 0.0
  %723 = vmatpush1.msra.mxu0 0.0
  %724 = vmatprep.subr.mxu0 0.0
  %725 = vmatpush1.msra.mxu0 0.0
  %726 = vmatprep.subr.mxu0 0.0
  %727 = vmatpush1.msra.mxu0 0.0
  %728 = vmatprep.subr.mxu0 0.0
  %729 = vmatpush1.msra.mxu0 0.0
  %730 = vmatprep.subr.mxu0 0.0
  %731 = vmatpush1.msra.mxu0 0.0
  %732 = vmatprep.subr.mxu0 0.0
  %733 = vmatpush1.msra.mxu0 0.0
  %734 = vmatprep.subr.mxu0 0.0
  %735 = vmatpush1.msra.mxu0 0.0
  %736 = vmatprep.subr.mxu0 0.0
  %737 = vmatpush1.msra.mxu0 0.0
  %738 = vmatprep.subr.mxu0 0.0
  %739 = vmatpush1.msra.mxu0 0.0
  %740 = vmatprep.subr.mxu0 0.0
  %741 = vmatpush1.msra.mxu0 0.0
  %742 = vmatprep.subr.mxu0 0.0
  %743 = vmatpush1.msra.mxu0 0.0
  %744 = vmatprep.subr.mxu0 0.0
  %745 = vmatpush1.msra.mxu0 0.0
  %746 = vmatprep.subr.mxu0 0.0
  %747 = vmatpush1.msra.mxu0 0.0
  %748 = vmatprep.subr.mxu0 0.0
  %749 = vmatpush1.msra.mxu0 0.0
  %750 = vmatprep.subr.mxu0 0.0
  %751 = vmatpush1.msra.mxu0 0.0
  %752 = vmatprep.subr.mxu0 0.0
  %753 = vmatpush1.msra.mxu0 0.0
  %754 = vmatprep.subr.mxu0 0.0
  %755 = vmatpush1.msra.mxu0 0.0
  %756 = vmatprep.subr.mxu0 0.0
  %757 = vmatpush1.msra.mxu0 0.0
  %758 = vmatprep.subr.mxu0 0.0
  %759 = vmatpush1.msra.mxu0 0.0
  %760 = vmatprep.subr.mxu0 0.0
  %761 = vmatpush1.msra.mxu0 0.0
  %762 = vmatprep.subr.mxu0 0.0
  %763 = vmatpush1.msra.mxu0 0.0
  %764 = vmatprep.mubr.f32.mxu0 0.0
  %765 = vmatmul.mubr.f32.gmra.mrb[0].mxu0 %v689
  %v766 = vpop.f32.mrb[0].mxu0
  %v767 = vadd.f32 0.0, %v766
  %v768 = vpop.f32.mrb[0].mxu0
  %769 = vmatprep.mubr.f32.mxu0 0.0
  %770 = vmatmul.mubr.f32.gmra.mrb[0].mxu0 %v692
  %v771 = vpop.f32.mrb[0].mxu0
  %v772 = vadd.f32 0.0, %v771
  %v773 = vpop.f32.mrb[0].mxu0
  %774 = vmatprep.mubr.f32.mxu0 0.0
  %775 = vmatmul.mubr.f32.gmra.mrb[0].mxu0 %v695
  %v776 = vpop.f32.mrb[0].mxu0
  %v777 = vadd.f32 0.0, %v776
  %v778 = vpop.f32.mrb[0].mxu0
  %779 = vmatprep.mubr.f32.mxu0 0.0
  %780 = vmatmul.mubr.f32.gmra.mrb[0].mxu0 %v698
  %v781 = vpop.f32.mrb[0].mxu0
  %v782 = vadd.f32 0.0, %v781
  %v783 = vpop.f32.mrb[0].mxu0
  %784 = vdwg.mxu0
  %v786 = vsel %vm271, %v767, 0
  %v789 = vsel %vm271, %v772, 0
  %v792 = vsel %vm271, %v777, 0
  %v795 = vsel %vm271, %v782, 0
  %797 = vmatprep.subr.mxu0 0.0
  %798 = vmatpush1.msra.mxu0 %v58
  %799 = vmatprep.subr.mxu0 0.0
  %800 = vmatpush1.msra.mxu0 0.0
  %801 = vmatprep.subr.mxu0 0.0
  %802 = vmatpush1.msra.mxu0 0.0
  %803 = vmatprep.subr.mxu0 0.0
  %804 = vmatpush1.msra.mxu0 0.0
  %805 = vmatprep.subr.mxu0 0.0
  %806 = vmatpush1.msra.mxu0 0.0
  %807 = vmatprep.subr.mxu0 0.0
  %808 = vmatpush1.msra.mxu0 0.0
  %809 = vmatprep.subr.mxu0 0.0
  %810 = vmatpush1.msra.mxu0 0.0
  %811 = vmatprep.subr.mxu0 0.0
  %812 = vmatpush1.msra.mxu0 0.0
  %813 = vmatprep.subr.mxu0 0.0
  %814 = vmatpush1.msra.mxu0 0.0
  %815 = vmatprep.subr.mxu0 0.0
  %816 = vmatpush1.msra.mxu0 0.0
  %817 = vmatprep.subr.mxu0 0.0
  %818 = vmatpush1.msra.mxu0 0.0
  %819 = vmatprep.subr.mxu0 0.0
  %820 = vmatpush1.msra.mxu0 0.0
  %821 = vmatprep.subr.mxu0 0.0
  %822 = vmatpush1.msra.mxu0 0.0
  %823 = vmatprep.subr.mxu0 0.0
  %824 = vmatpush1.msra.mxu0 0.0
  %825 = vmatprep.subr.mxu0 0.0
  %826 = vmatpush1.msra.mxu0 0.0
  %827 = vmatprep.subr.mxu0 0.0
  %828 = vmatpush1.msra.mxu0 0.0
  %829 = vmatprep.subr.mxu0 0.0
  %830 = vmatpush1.msra.mxu0 0.0
  %831 = vmatprep.subr.mxu0 0.0
  %832 = vmatpush1.msra.mxu0 0.0
  %833 = vmatprep.subr.mxu0 0.0
  %834 = vmatpush1.msra.mxu0 0.0
  %835 = vmatprep.subr.mxu0 0.0
  %836 = vmatpush1.msra.mxu0 0.0
  %837 = vmatprep.subr.mxu0 0.0
  %838 = vmatpush1.msra.mxu0 0.0
  %839 = vmatprep.subr.mxu0 0.0
  %840 = vmatpush1.msra.mxu0 0.0
  %841 = vmatprep.subr.mxu0 0.0
  %842 = vmatpush1.msra.mxu0 0.0
  %843 = vmatprep.subr.mxu0 0.0
  %844 = vmatpush1.msra.mxu0 0.0
  %845 = vmatprep.subr.mxu0 0.0
  %846 = vmatpush1.msra.mxu0 0.0
  %847 = vmatprep.subr.mxu0 0.0
  %848 = vmatpush1.msra.mxu0 0.0
  %849 = vmatprep.subr.mxu0 0.0
  %850 = vmatpush1.msra.mxu0 0.0
  %851 = vmatprep.subr.mxu0 0.0
  %852 = vmatpush1.msra.mxu0 0.0
  %853 = vmatprep.subr.mxu0 0.0
  %854 = vmatpush1.msra.mxu0 0.0
  %855 = vmatprep.subr.mxu0 0.0
  %856 = vmatpush1.msra.mxu0 0.0
  %857 = vmatprep.subr.mxu0 0.0
  %858 = vmatpush1.msra.mxu0 0.0
  %859 = vmatprep.subr.mxu0 0.0
  %860 = vmatpush1.msra.mxu0 0.0
  %861 = vmatprep.mubr.f32.mxu0 0.0
  %862 = vmatmul.mubr.f32.gmra.mrb[0].mxu0 %v786
  %v863 = vpop.f32.mrb[0].mxu0
  %v864 = vadd.f32 0.0, %v863
  %v865 = vpop.f32.mrb[0].mxu0
  %866 = vmatprep.mubr.f32.mxu0 0.0
  %867 = vmatmul.mubr.f32.gmra.mrb[0].mxu0 %v789
  %v868 = vpop.f32.mrb[0].mxu0
  %v869 = vadd.f32 0.0, %v868
  %v870 = vpop.f32.mrb[0].mxu0
  %871 = vmatprep.mubr.f32.mxu0 0.0
  %872 = vmatmul.mubr.f32.gmra.mrb[0].mxu0 %v792
  %v873 = vpop.f32.mrb[0].mxu0
  %v874 = vadd.f32 0.0, %v873
  %v875 = vpop.f32.mrb[0].mxu0
  %876 = vmatprep.mubr.f32.mxu0 0.0
  %877 = vmatmul.mubr.f32.gmra.mrb[0].mxu0 %v795
  %v878 = vpop.f32.mrb[0].mxu0
  %v879 = vadd.f32 0.0, %v878
  %v880 = vpop.f32.mrb[0].mxu0
  %881 = vdwg.mxu0
  %v882 = vmul.f32 %v869, %v109
  %v883 = vmul.f32 %v874, %v113
  %v884 = vmul.f32 %v879, %v117
  %v885 = vadd.f32 %v882, %v883
  %v886 = vadd.f32 %v885, %v884
  %v887 = vmul.f32 %v489, %v864
  %v888 = vmul.f32 %v886, 0.57735026
  %v889 = vmul.f32 %v504, %v888
  %v890 = vadd.f32 %v887, %v889
  %v891 = vmul.f32 %v494, %v864
  %v892 = vmul.f32 %v891, %v109
  %v893 = vmul.f32 %v891, %v113
  %v894 = vmul.f32 %v891, %v117
  %v895 = vmul.f32 %v499, %v869
  %v896 = vmul.f32 %v499, %v874
  %v897 = vmul.f32 %v499, %v879
  %v898 = vadd.f32 %v892, %v895
  %v899 = vadd.f32 %v893, %v896
  %v900 = vadd.f32 %v894, %v897
  %vm901 = vcmask 195584
  %v903 = vsel %vm901, %v890, 0
  %v906 = vsel %vm901, %v898, 0
  %v909 = vsel %vm901, %v899, 0
  %v912 = vsel %vm901, %v900, 0
  %914 = vmatprep.subr.mxu0 0.0
  %915 = vmatpush1.msra.mxu0 %v79
  %916 = vmatprep.subr.mxu0 0.0
  %917 = vmatpush1.msra.mxu0 %v80
  %918 = vmatprep.subr.mxu0 0.0
  %919 = vmatpush1.msra.mxu0 %v81
  %920 = vmatprep.subr.mxu0 0.0
  %921 = vmatpush1.msra.mxu0 0.0
  %922 = vmatprep.subr.mxu0 0.0
  %923 = vmatpush1.msra.mxu0 0.0
  %924 = vmatprep.subr.mxu0 0.0
  %925 = vmatpush1.msra.mxu0 0.0
  %926 = vmatprep.subr.mxu0 0.0
  %927 = vmatpush1.msra.mxu0 0.0
  %928 = vmatprep.subr.mxu0 0.0
  %929 = vmatpush1.msra.mxu0 0.0
  %930 = vmatprep.subr.mxu0 0.0
  %931 = vmatpush1.msra.mxu0 0.0
  %932 = vmatprep.subr.mxu0 0.0
  %933 = vmatpush1.msra.mxu0 0.0
  %934 = vmatprep.subr.mxu0 0.0
  %935 = vmatpush1.msra.mxu0 0.0
  %936 = vmatprep.subr.mxu0 0.0
  %937 = vmatpush1.msra.mxu0 0.0
  %938 = vmatprep.subr.mxu0 0.0
  %939 = vmatpush1.msra.mxu0 0.0
  %940 = vmatprep.subr.mxu0 0.0
  %941 = vmatpush1.msra.mxu0 0.0
  %942 = vmatprep.subr.mxu0 0.0
  %943 = vmatpush1.msra.mxu0 0.0
  %944 = vmatprep.subr.mxu0 0.0
  %945 = vmatpush1.msra.mxu0 0.0
  %946 = vmatprep.subr.mxu0 0.0
  %947 = vmatpush1.msra.mxu0 0.0
  %948 = vmatprep.subr.mxu0 0.0
  %949 = vmatpush1.msra.mxu0 0.0
  %950 = vmatprep.subr.mxu0 0.0
  %951 = vmatpush1.msra.mxu0 0.0
  %952 = vmatprep.subr.mxu0 0.0
  %953 = vmatpush1.msra.mxu0 0.0
  %954 = vmatprep.subr.mxu0 0.0
  %955 = vmatpush1.msra.mxu0 0.0
  %956 = vmatprep.subr.mxu0 0.0
  %957 = vmatpush1.msra.mxu0 0.0
  %958 = vmatprep.subr.mxu0 0.0
  %959 = vmatpush1.msra.mxu0 0.0
  %960 = vmatprep.subr.mxu0 0.0
  %961 = vmatpush1.msra.mxu0 0.0
  %962 = vmatprep.subr.mxu0 0.0
  %963 = vmatpush1.msra.mxu0 0.0
  %964 = vmatprep.subr.mxu0 0.0
  %965 = vmatpush1.msra.mxu0 0.0
  %966 = vmatprep.subr.mxu0 0.0
  %967 = vmatpush1.msra.mxu0 0.0
  %968 = vmatprep.subr.mxu0 0.0
  %969 = vmatpush1.msra.mxu0 0.0
  %970 = vmatprep.subr.mxu0 0.0
  %971 = vmatpush1.msra.mxu0 0.0
  %972 = vmatprep.subr.mxu0 0.0
  %973 = vmatpush1.msra.mxu0 0.0
  %974 = vmatprep.subr.mxu0 0.0
  %975 = vmatpush1.msra.mxu0 0.0
  %976 = vmatprep.subr.mxu0 0.0
  %977 = vmatpush1.msra.mxu0 0.0
  %978 = vmatprep.mubr.f32.mxu0 0.0
  %979 = vmatmul.mubr.f32.gmra.mrb[0].mxu0 %v903
  %v980 = vpop.f32.mrb[0].mxu0
  %v981 = vadd.f32 0.0, %v980
  %v982 = vpop.f32.mrb[0].mxu0
  %983 = vmatprep.mubr.f32.mxu0 0.0
  %984 = vmatmul.mubr.f32.gmra.mrb[0].mxu0 %v906
  %v985 = vpop.f32.mrb[0].mxu0
  %v986 = vadd.f32 0.0, %v985
  %v987 = vpop.f32.mrb[0].mxu0
  %988 = vmatprep.mubr.f32.mxu0 0.0
  %989 = vmatmul.mubr.f32.gmra.mrb[0].mxu0 %v909
  %v990 = vpop.f32.mrb[0].mxu0
  %v991 = vadd.f32 0.0, %v990
  %v992 = vpop.f32.mrb[0].mxu0
  %993 = vmatprep.mubr.f32.mxu0 0.0
  %994 = vmatmul.mubr.f32.gmra.mrb[0].mxu0 %v912
  %v995 = vpop.f32.mrb[0].mxu0
  %v996 = vadd.f32 0.0, %v995
  %v997 = vpop.f32.mrb[0].mxu0
  %998 = vdwg.mxu0
  %v999 = vmul.f32 %v981, 0.33333334
  %v1000 = vmul.f32 %v986, 0.33333334
  %v1001 = vmul.f32 %v991, 0.33333334
  %v1002 = vmul.f32 %v996, 0.33333334
  %v1003 = vlaneseq
  %v1004 = vshrl.u32 %v1003, 7
  %v1005 = vsub.s32 0, %v1004
  %v1006 = vrot.slane %v47, %v1005
  %v1007 = vmul.f32 %v1006, %v603
  %v1008 = vmul.f32 %v1006, 0.0
  %v1009 = vlaneseq
  %v1010 = vshrl.u32 %v1009, 7
  %v1011 = vsub.s32 1, %v1010
  %v1012 = vrot.slane %v47, %v1011
  %v1013 = vmul.f32 %v1012, %v603
  %v1014 = vmul.f32 %v1012, 0.0
  %v1015 = vlaneseq
  %v1016 = vshrl.u32 %v1015, 7
  %v1017 = vsub.s32 2, %v1016
  %v1018 = vrot.slane %v47, %v1017
  %v1019 = vmul.f32 %v1018, %v603
  %v1020 = vmul.f32 %v1018, 0.0
  %1021 = vmatprep.subr.mxu0 0.0
  %1022 = vmatpush1.msra.mxu0 %v999
  %1023 = vmatprep.subr.mxu0 0.0
  %1024 = vmatpush1.msra.mxu0 %v1000
  %1025 = vmatprep.subr.mxu0 0.0
  %1026 = vmatpush1.msra.mxu0 %v1001
  %1027 = vmatprep.subr.mxu0 0.0
  %1028 = vmatpush1.msra.mxu0 %v1002
  %1029 = vmatprep.subr.mxu0 0.0
  %1030 = vmatpush1.msra.mxu0 %v1007
  %1031 = vmatprep.subr.mxu0 0.0
  %1032 = vmatpush1.msra.mxu0 %v1008
  %1033 = vmatprep.subr.mxu0 0.0
  %1034 = vmatpush1.msra.mxu0 %v1008
  %1035 = vmatprep.subr.mxu0 0.0
  %1036 = vmatpush1.msra.mxu0 %v1008
  %1037 = vmatprep.subr.mxu0 0.0
  %1038 = vmatpush1.msra.mxu0 %v1013
  %1039 = vmatprep.subr.mxu0 0.0
  %1040 = vmatpush1.msra.mxu0 %v1014
  %1041 = vmatprep.subr.mxu0 0.0
  %1042 = vmatpush1.msra.mxu0 %v1014
  %1043 = vmatprep.subr.mxu0 0.0
  %1044 = vmatpush1.msra.mxu0 %v1014
  %1045 = vmatprep.subr.mxu0 0.0
  %1046 = vmatpush1.msra.mxu0 %v1019
  %1047 = vmatprep.subr.mxu0 0.0
  %1048 = vmatpush1.msra.mxu0 %v1020
  %1049 = vmatprep.subr.mxu0 0.0
  %1050 = vmatpush1.msra.mxu0 %v1020
  %1051 = vmatprep.subr.mxu0 0.0
  %1052 = vmatpush1.msra.mxu0 %v1020
  %1053 = vmatprep.subr.mxu0 0.0
  %1054 = vmatpush1.msra.mxu0 0.0
  %1055 = vmatprep.subr.mxu0 0.0
  %1056 = vmatpush1.msra.mxu0 0.0
  %1057 = vmatprep.subr.mxu0 0.0
  %1058 = vmatpush1.msra.mxu0 0.0
  %1059 = vmatprep.subr.mxu0 0.0
  %1060 = vmatpush1.msra.mxu0 0.0
  %1061 = vmatprep.subr.mxu0 0.0
  %1062 = vmatpush1.msra.mxu0 0.0
  %1063 = vmatprep.subr.mxu0 0.0
  %1064 = vmatpush1.msra.mxu0 0.0
  %1065 = vmatprep.subr.mxu0 0.0
  %1066 = vmatpush1.msra.mxu0 0.0
  %1067 = vmatprep.subr.mxu0 0.0
  %1068 = vmatpush1.msra.mxu0 0.0
  %1069 = vmatprep.subr.mxu0 0.0
  %1070 = vmatpush1.msra.mxu0 0.0
  %1071 = vmatprep.subr.mxu0 0.0
  %1072 = vmatpush1.msra.mxu0 0.0
  %1073 = vmatprep.subr.mxu0 0.0
  %1074 = vmatpush1.msra.mxu0 0.0
  %1075 = vmatprep.subr.mxu0 0.0
  %1076 = vmatpush1.msra.mxu0 0.0
  %1077 = vmatprep.subr.mxu0 0.0
  %1078 = vmatpush1.msra.mxu0 0.0
  %1079 = vmatprep.subr.mxu0 0.0
  %1080 = vmatpush1.msra.mxu0 0.0
  %1081 = vmatprep.subr.mxu0 0.0
  %1082 = vmatpush1.msra.mxu0 0.0
  %1083 = vmatprep.subr.mxu0 0.0
  %1084 = vmatpush1.msra.mxu0 0.0
  %1085 = vmatprep.mubr.f32.mxu0 0.0
  %1086 = vmatmul.mubr.f32.gmra.mrb[0].mxu0 %v684
  %v1087 = vpop.f32.mrb[0].mxu0
  %v1088 = vadd.f32 0.0, %v1087
  %v1089 = vpop.f32.mrb[0].mxu0
  %1090 = vmatprep.mubr.f32.mxu0 0.0
  %1091 = vmatmul.mubr.f32.gmra.mrb[0].mxu0 %v685
  %v1092 = vpop.f32.mrb[0].mxu0
  %v1093 = vadd.f32 0.0, %v1092
  %v1094 = vpop.f32.mrb[0].mxu0
  %1095 = vmatprep.mubr.f32.mxu0 0.0
  %1096 = vmatmul.mubr.f32.gmra.mrb[0].mxu0 %v686
  %v1097 = vpop.f32.mrb[0].mxu0
  %v1098 = vadd.f32 0.0, %v1097
  %v1099 = vpop.f32.mrb[0].mxu0
  %1100 = vmatprep.mubr.f32.mxu0 0.0
  %1101 = vmatmul.mubr.f32.gmra.mrb[0].mxu0 %v687
  %v1102 = vpop.f32.mrb[0].mxu0
  %v1103 = vadd.f32 0.0, %v1102
  %v1104 = vpop.f32.mrb[0].mxu0
  %1105 = vdwg.mxu0
  %v1106 = vld [vmem:[%s11] sm:$0x1]
  %v1108 = vsel %vm271, %v1106, 0
  %1110 = vmatprep.subr.mxu0 0.0
  %1111 = vmatpush1.msra.mxu0 %v1088
  %1112 = vmatprep.subr.mxu0 0.0
  %1113 = vmatpush1.msra.mxu0 0.0
  %1114 = vmatprep.subr.mxu0 0.0
  %1115 = vmatpush1.msra.mxu0 0.0
  %1116 = vmatprep.subr.mxu0 0.0
  %1117 = vmatpush1.msra.mxu0 0.0
  %1118 = vmatprep.subr.mxu0 0.0
  %1119 = vmatpush1.msra.mxu0 0.0
  %1120 = vmatprep.subr.mxu0 0.0
  %1121 = vmatpush1.msra.mxu0 0.0
  %1122 = vmatprep.subr.mxu0 0.0
  %1123 = vmatpush1.msra.mxu0 0.0
  %1124 = vmatprep.subr.mxu0 0.0
  %1125 = vmatpush1.msra.mxu0 0.0
  %1126 = vmatprep.subr.mxu0 0.0
  %1127 = vmatpush1.msra.mxu0 0.0
  %1128 = vmatprep.subr.mxu0 0.0
  %1129 = vmatpush1.msra.mxu0 0.0
  %1130 = vmatprep.subr.mxu0 0.0
  %1131 = vmatpush1.msra.mxu0 0.0
  %1132 = vmatprep.subr.mxu0 0.0
  %1133 = vmatpush1.msra.mxu0 0.0
  %1134 = vmatprep.subr.mxu0 0.0
  %1135 = vmatpush1.msra.mxu0 0.0
  %1136 = vmatprep.subr.mxu0 0.0
  %1137 = vmatpush1.msra.mxu0 0.0
  %1138 = vmatprep.subr.mxu0 0.0
  %1139 = vmatpush1.msra.mxu0 0.0
  %1140 = vmatprep.subr.mxu0 0.0
  %1141 = vmatpush1.msra.mxu0 0.0
  %1142 = vmatprep.subr.mxu0 0.0
  %1143 = vmatpush1.msra.mxu0 0.0
  %1144 = vmatprep.subr.mxu0 0.0
  %1145 = vmatpush1.msra.mxu0 0.0
  %1146 = vmatprep.subr.mxu0 0.0
  %1147 = vmatpush1.msra.mxu0 0.0
  %1148 = vmatprep.subr.mxu0 0.0
  %1149 = vmatpush1.msra.mxu0 0.0
  %1150 = vmatprep.subr.mxu0 0.0
  %1151 = vmatpush1.msra.mxu0 0.0
  %1152 = vmatprep.subr.mxu0 0.0
  %1153 = vmatpush1.msra.mxu0 0.0
  %1154 = vmatprep.subr.mxu0 0.0
  %1155 = vmatpush1.msra.mxu0 0.0
  %1156 = vmatprep.subr.mxu0 0.0
  %1157 = vmatpush1.msra.mxu0 0.0
  %1158 = vmatprep.subr.mxu0 0.0
  %1159 = vmatpush1.msra.mxu0 0.0
  %1160 = vmatprep.subr.mxu0 0.0
  %1161 = vmatpush1.msra.mxu0 0.0
  %1162 = vmatprep.subr.mxu0 0.0
  %1163 = vmatpush1.msra.mxu0 0.0
  %1164 = vmatprep.subr.mxu0 0.0
  %1165 = vmatpush1.msra.mxu0 0.0
  %1166 = vmatprep.subr.mxu0 0.0
  %1167 = vmatpush1.msra.mxu0 0.0
  %1168 = vmatprep.subr.mxu0 0.0
  %1169 = vmatpush1.msra.mxu0 0.0
  %1170 = vmatprep.subr.mxu0 0.0
  %1171 = vmatpush1.msra.mxu0 0.0
  %1172 = vmatprep.subr.mxu0 0.0
  %1173 = vmatpush1.msra.mxu0 0.0
  %1174 = vmatprep.mubr.f32.mxu0 0.0
  %1175 = vmatmul.mubr.f32.gmra.mrb[0].mxu0 %v1108
  %v1176 = vpop.f32.mrb[0].mxu0
  %v1177 = vadd.f32 0.0, %v1176
  %v1178 = vpop.f32.mrb[0].mxu0
  %1179 = vdwg.mxu0
  %s1180 = scalar_lea.vmem %s7, 32
  %v1181 = vld [vmem:[%s1180] sm:$0xff]
  %v1182 = vld [vmem:[%s1180 + $0x8] sm:$0xff]
  %v1183 = vld [vmem:[%s1180 + $0x10] sm:$0xff]
  %v1184 = vld [vmem:[%s1180 + $0x18] sm:$0xff]
  %s1185 = scalar_lea.vmem %s10, 32
  %v1186 = vld [vmem:[%s1185] sm:$0xff]
  %v1187 = vld [vmem:[%s1185 + $0x8] sm:$0xff]
  %v1188 = vld [vmem:[%s1185 + $0x10] sm:$0xff]
  %v1189 = vld [vmem:[%s1185 + $0x18] sm:$0xff]
  %v1191 = vsel %vm397, %v1181, 0
  %v1194 = vsel %vm397, %v1182, 0
  %v1197 = vsel %vm397, %v1183, 0
  %v1200 = vsel %vm397, %v1184, 0
  %1202 = vmatprep.subr.mxu0 0.0
  %1203 = vmatpush1.msra.mxu0 %v1088
  %1204 = vmatprep.subr.mxu0 0.0
  %1205 = vmatpush1.msra.mxu0 %v1093
  %1206 = vmatprep.subr.mxu0 0.0
  %1207 = vmatpush1.msra.mxu0 %v1098
  %1208 = vmatprep.subr.mxu0 0.0
  %1209 = vmatpush1.msra.mxu0 %v1103
  %1210 = vmatprep.subr.mxu0 0.0
  %1211 = vmatpush1.msra.mxu0 0.0
  %1212 = vmatprep.subr.mxu0 0.0
  %1213 = vmatpush1.msra.mxu0 0.0
  %1214 = vmatprep.subr.mxu0 0.0
  %1215 = vmatpush1.msra.mxu0 0.0
  %1216 = vmatprep.subr.mxu0 0.0
  %1217 = vmatpush1.msra.mxu0 0.0
  %1218 = vmatprep.subr.mxu0 0.0
  %1219 = vmatpush1.msra.mxu0 0.0
  %1220 = vmatprep.subr.mxu0 0.0
  %1221 = vmatpush1.msra.mxu0 0.0
  %1222 = vmatprep.subr.mxu0 0.0
  %1223 = vmatpush1.msra.mxu0 0.0
  %1224 = vmatprep.subr.mxu0 0.0
  %1225 = vmatpush1.msra.mxu0 0.0
  %1226 = vmatprep.subr.mxu0 0.0
  %1227 = vmatpush1.msra.mxu0 0.0
  %1228 = vmatprep.subr.mxu0 0.0
  %1229 = vmatpush1.msra.mxu0 0.0
  %1230 = vmatprep.subr.mxu0 0.0
  %1231 = vmatpush1.msra.mxu0 0.0
  %1232 = vmatprep.subr.mxu0 0.0
  %1233 = vmatpush1.msra.mxu0 0.0
  %1234 = vmatprep.subr.mxu0 0.0
  %1235 = vmatpush1.msra.mxu0 0.0
  %1236 = vmatprep.subr.mxu0 0.0
  %1237 = vmatpush1.msra.mxu0 0.0
  %1238 = vmatprep.subr.mxu0 0.0
  %1239 = vmatpush1.msra.mxu0 0.0
  %1240 = vmatprep.subr.mxu0 0.0
  %1241 = vmatpush1.msra.mxu0 0.0
  %1242 = vmatprep.subr.mxu0 0.0
  %1243 = vmatpush1.msra.mxu0 0.0
  %1244 = vmatprep.subr.mxu0 0.0
  %1245 = vmatpush1.msra.mxu0 0.0
  %1246 = vmatprep.subr.mxu0 0.0
  %1247 = vmatpush1.msra.mxu0 0.0
  %1248 = vmatprep.subr.mxu0 0.0
  %1249 = vmatpush1.msra.mxu0 0.0
  %1250 = vmatprep.subr.mxu0 0.0
  %1251 = vmatpush1.msra.mxu0 0.0
  %1252 = vmatprep.subr.mxu0 0.0
  %1253 = vmatpush1.msra.mxu0 0.0
  %1254 = vmatprep.subr.mxu0 0.0
  %1255 = vmatpush1.msra.mxu0 0.0
  %1256 = vmatprep.subr.mxu0 0.0
  %1257 = vmatpush1.msra.mxu0 0.0
  %1258 = vmatprep.subr.mxu0 0.0
  %1259 = vmatpush1.msra.mxu0 0.0
  %1260 = vmatprep.subr.mxu0 0.0
  %1261 = vmatpush1.msra.mxu0 0.0
  %1262 = vmatprep.subr.mxu0 0.0
  %1263 = vmatpush1.msra.mxu0 0.0
  %1264 = vmatprep.subr.mxu0 0.0
  %1265 = vmatpush1.msra.mxu0 0.0
  %1266 = vmatprep.mubr.f32.mxu0 0.0
  %1267 = vmatmul.mubr.f32.gmra.mrb[0].mxu0 %v1191
  %v1268 = vpop.f32.mrb[0].mxu0
  %v1269 = vadd.f32 0.0, %v1268
  %v1270 = vpop.f32.mrb[0].mxu0
  %1271 = vmatprep.mubr.f32.mxu0 0.0
  %1272 = vmatmul.mubr.f32.gmra.mrb[0].mxu0 %v1194
  %v1273 = vpop.f32.mrb[0].mxu0
  %v1274 = vadd.f32 0.0, %v1273
  %v1275 = vpop.f32.mrb[0].mxu0
  %1276 = vmatprep.mubr.f32.mxu0 0.0
  %1277 = vmatmul.mubr.f32.gmra.mrb[0].mxu0 %v1197
  %v1278 = vpop.f32.mrb[0].mxu0
  %v1279 = vadd.f32 0.0, %v1278
  %v1280 = vpop.f32.mrb[0].mxu0
  %1281 = vmatprep.mubr.f32.mxu0 0.0
  %1282 = vmatmul.mubr.f32.gmra.mrb[0].mxu0 %v1200
  %v1283 = vpop.f32.mrb[0].mxu0
  %v1284 = vadd.f32 0.0, %v1283
  %v1285 = vpop.f32.mrb[0].mxu0
  %1286 = vdwg.mxu0
  %v1288 = vsel %vm271, %v1269, 0
  %v1291 = vsel %vm271, %v1274, 0
  %v1294 = vsel %vm271, %v1279, 0
  %v1297 = vsel %vm271, %v1284, 0
  %1299 = vmatprep.subr.mxu0 0.0
  %1300 = vmatpush1.msra.mxu0 %v58
  %1301 = vmatprep.subr.mxu0 0.0
  %1302 = vmatpush1.msra.mxu0 0.0
  %1303 = vmatprep.subr.mxu0 0.0
  %1304 = vmatpush1.msra.mxu0 0.0
  %1305 = vmatprep.subr.mxu0 0.0
  %1306 = vmatpush1.msra.mxu0 0.0
  %1307 = vmatprep.subr.mxu0 0.0
  %1308 = vmatpush1.msra.mxu0 0.0
  %1309 = vmatprep.subr.mxu0 0.0
  %1310 = vmatpush1.msra.mxu0 0.0
  %1311 = vmatprep.subr.mxu0 0.0
  %1312 = vmatpush1.msra.mxu0 0.0
  %1313 = vmatprep.subr.mxu0 0.0
  %1314 = vmatpush1.msra.mxu0 0.0
  %1315 = vmatprep.subr.mxu0 0.0
  %1316 = vmatpush1.msra.mxu0 0.0
  %1317 = vmatprep.subr.mxu0 0.0
  %1318 = vmatpush1.msra.mxu0 0.0
  %1319 = vmatprep.subr.mxu0 0.0
  %1320 = vmatpush1.msra.mxu0 0.0
  %1321 = vmatprep.subr.mxu0 0.0
  %1322 = vmatpush1.msra.mxu0 0.0
  %1323 = vmatprep.subr.mxu0 0.0
  %1324 = vmatpush1.msra.mxu0 0.0
  %1325 = vmatprep.subr.mxu0 0.0
  %1326 = vmatpush1.msra.mxu0 0.0
  %1327 = vmatprep.subr.mxu0 0.0
  %1328 = vmatpush1.msra.mxu0 0.0
  %1329 = vmatprep.subr.mxu0 0.0
  %1330 = vmatpush1.msra.mxu0 0.0
  %1331 = vmatprep.subr.mxu0 0.0
  %1332 = vmatpush1.msra.mxu0 0.0
  %1333 = vmatprep.subr.mxu0 0.0
  %1334 = vmatpush1.msra.mxu0 0.0
  %1335 = vmatprep.subr.mxu0 0.0
  %1336 = vmatpush1.msra.mxu0 0.0
  %1337 = vmatprep.subr.mxu0 0.0
  %1338 = vmatpush1.msra.mxu0 0.0
  %1339 = vmatprep.subr.mxu0 0.0
  %1340 = vmatpush1.msra.mxu0 0.0
  %1341 = vmatprep.subr.mxu0 0.0
  %1342 = vmatpush1.msra.mxu0 0.0
  %1343 = vmatprep.subr.mxu0 0.0
  %1344 = vmatpush1.msra.mxu0 0.0
  %1345 = vmatprep.subr.mxu0 0.0
  %1346 = vmatpush1.msra.mxu0 0.0
  %1347 = vmatprep.subr.mxu0 0.0
  %1348 = vmatpush1.msra.mxu0 0.0
  %1349 = vmatprep.subr.mxu0 0.0
  %1350 = vmatpush1.msra.mxu0 0.0
  %1351 = vmatprep.subr.mxu0 0.0
  %1352 = vmatpush1.msra.mxu0 0.0
  %1353 = vmatprep.subr.mxu0 0.0
  %1354 = vmatpush1.msra.mxu0 0.0
  %1355 = vmatprep.subr.mxu0 0.0
  %1356 = vmatpush1.msra.mxu0 0.0
  %1357 = vmatprep.subr.mxu0 0.0
  %1358 = vmatpush1.msra.mxu0 0.0
  %1359 = vmatprep.subr.mxu0 0.0
  %1360 = vmatpush1.msra.mxu0 0.0
  %1361 = vmatprep.subr.mxu0 0.0
  %1362 = vmatpush1.msra.mxu0 0.0
  %1363 = vmatprep.mubr.f32.mxu0 0.0
  %1364 = vmatmul.mubr.f32.gmra.mrb[0].mxu0 %v1288
  %v1365 = vpop.f32.mrb[0].mxu0
  %v1366 = vadd.f32 0.0, %v1365
  %v1367 = vpop.f32.mrb[0].mxu0
  %1368 = vmatprep.mubr.f32.mxu0 0.0
  %1369 = vmatmul.mubr.f32.gmra.mrb[0].mxu0 %v1291
  %v1370 = vpop.f32.mrb[0].mxu0
  %v1371 = vadd.f32 0.0, %v1370
  %v1372 = vpop.f32.mrb[0].mxu0
  %1373 = vmatprep.mubr.f32.mxu0 0.0
  %1374 = vmatmul.mubr.f32.gmra.mrb[0].mxu0 %v1294
  %v1375 = vpop.f32.mrb[0].mxu0
  %v1376 = vadd.f32 0.0, %v1375
  %v1377 = vpop.f32.mrb[0].mxu0
  %1378 = vmatprep.mubr.f32.mxu0 0.0
  %1379 = vmatmul.mubr.f32.gmra.mrb[0].mxu0 %v1297
  %v1380 = vpop.f32.mrb[0].mxu0
  %v1381 = vadd.f32 0.0, %v1380
  %v1382 = vpop.f32.mrb[0].mxu0
  %1383 = vdwg.mxu0
  %v1384 = vmul.f32 %v1371, %v109
  %v1385 = vmul.f32 %v1376, %v113
  %v1386 = vmul.f32 %v1381, %v117
  %v1387 = vadd.f32 %v1384, %v1385
  %v1388 = vadd.f32 %v1387, %v1386
  %v1389 = vmul.f32 %v509, %v1366
  %v1390 = vmul.f32 %v1388, 0.57735026
  %v1391 = vmul.f32 %v524, %v1390
  %v1392 = vadd.f32 %v1389, %v1391
  %v1393 = vmul.f32 %v514, %v1366
  %v1394 = vmul.f32 %v1393, %v109
  %v1395 = vmul.f32 %v1393, %v113
  %v1396 = vmul.f32 %v1393, %v117
  %v1397 = vmul.f32 %v519, %v1371
  %v1398 = vmul.f32 %v519, %v1376
  %v1399 = vmul.f32 %v519, %v1381
  %v1400 = vadd.f32 %v1394, %v1397
  %v1401 = vadd.f32 %v1395, %v1398
  %v1402 = vadd.f32 %v1396, %v1399
  %v1404 = vsel %vm901, %v1392, 0
  %v1407 = vsel %vm901, %v1400, 0
  %v1410 = vsel %vm901, %v1401, 0
  %v1413 = vsel %vm901, %v1402, 0
  %1415 = vmatprep.subr.mxu0 0.0
  %1416 = vmatpush1.msra.mxu0 %v79
  %1417 = vmatprep.subr.mxu0 0.0
  %1418 = vmatpush1.msra.mxu0 %v80
  %1419 = vmatprep.subr.mxu0 0.0
  %1420 = vmatpush1.msra.mxu0 %v81
  %1421 = vmatprep.subr.mxu0 0.0
  %1422 = vmatpush1.msra.mxu0 0.0
  %1423 = vmatprep.subr.mxu0 0.0
  %1424 = vmatpush1.msra.mxu0 0.0
  %1425 = vmatprep.subr.mxu0 0.0
  %1426 = vmatpush1.msra.mxu0 0.0
  %1427 = vmatprep.subr.mxu0 0.0
  %1428 = vmatpush1.msra.mxu0 0.0
  %1429 = vmatprep.subr.mxu0 0.0
  %1430 = vmatpush1.msra.mxu0 0.0
  %1431 = vmatprep.subr.mxu0 0.0
  %1432 = vmatpush1.msra.mxu0 0.0
  %1433 = vmatprep.subr.mxu0 0.0
  %1434 = vmatpush1.msra.mxu0 0.0
  %1435 = vmatprep.subr.mxu0 0.0
  %1436 = vmatpush1.msra.mxu0 0.0
  %1437 = vmatprep.subr.mxu0 0.0
  %1438 = vmatpush1.msra.mxu0 0.0
  %1439 = vmatprep.subr.mxu0 0.0
  %1440 = vmatpush1.msra.mxu0 0.0
  %1441 = vmatprep.subr.mxu0 0.0
  %1442 = vmatpush1.msra.mxu0 0.0
  %1443 = vmatprep.subr.mxu0 0.0
  %1444 = vmatpush1.msra.mxu0 0.0
  %1445 = vmatprep.subr.mxu0 0.0
  %1446 = vmatpush1.msra.mxu0 0.0
  %1447 = vmatprep.subr.mxu0 0.0
  %1448 = vmatpush1.msra.mxu0 0.0
  %1449 = vmatprep.subr.mxu0 0.0
  %1450 = vmatpush1.msra.mxu0 0.0
  %1451 = vmatprep.subr.mxu0 0.0
  %1452 = vmatpush1.msra.mxu0 0.0
  %1453 = vmatprep.subr.mxu0 0.0
  %1454 = vmatpush1.msra.mxu0 0.0
  %1455 = vmatprep.subr.mxu0 0.0
  %1456 = vmatpush1.msra.mxu0 0.0
  %1457 = vmatprep.subr.mxu0 0.0
  %1458 = vmatpush1.msra.mxu0 0.0
  %1459 = vmatprep.subr.mxu0 0.0
  %1460 = vmatpush1.msra.mxu0 0.0
  %1461 = vmatprep.subr.mxu0 0.0
  %1462 = vmatpush1.msra.mxu0 0.0
  %1463 = vmatprep.subr.mxu0 0.0
  %1464 = vmatpush1.msra.mxu0 0.0
  %1465 = vmatprep.subr.mxu0 0.0
  %1466 = vmatpush1.msra.mxu0 0.0
  %1467 = vmatprep.subr.mxu0 0.0
  %1468 = vmatpush1.msra.mxu0 0.0
  %1469 = vmatprep.subr.mxu0 0.0
  %1470 = vmatpush1.msra.mxu0 0.0
  %1471 = vmatprep.subr.mxu0 0.0
  %1472 = vmatpush1.msra.mxu0 0.0
  %1473 = vmatprep.subr.mxu0 0.0
  %1474 = vmatpush1.msra.mxu0 0.0
  %1475 = vmatprep.subr.mxu0 0.0
  %1476 = vmatpush1.msra.mxu0 0.0
  %1477 = vmatprep.subr.mxu0 0.0
  %1478 = vmatpush1.msra.mxu0 0.0
  %1479 = vmatprep.mubr.f32.mxu0 0.0
  %1480 = vmatmul.mubr.f32.gmra.mrb[0].mxu0 %v1404
  %v1481 = vpop.f32.mrb[0].mxu0
  %v1482 = vadd.f32 0.0, %v1481
  %v1483 = vpop.f32.mrb[0].mxu0
  %1484 = vmatprep.mubr.f32.mxu0 0.0
  %1485 = vmatmul.mubr.f32.gmra.mrb[0].mxu0 %v1407
  %v1486 = vpop.f32.mrb[0].mxu0
  %v1487 = vadd.f32 0.0, %v1486
  %v1488 = vpop.f32.mrb[0].mxu0
  %1489 = vmatprep.mubr.f32.mxu0 0.0
  %1490 = vmatmul.mubr.f32.gmra.mrb[0].mxu0 %v1410
  %v1491 = vpop.f32.mrb[0].mxu0
  %v1492 = vadd.f32 0.0, %v1491
  %v1493 = vpop.f32.mrb[0].mxu0
  %1494 = vmatprep.mubr.f32.mxu0 0.0
  %1495 = vmatmul.mubr.f32.gmra.mrb[0].mxu0 %v1413
  %v1496 = vpop.f32.mrb[0].mxu0
  %v1497 = vadd.f32 0.0, %v1496
  %v1498 = vpop.f32.mrb[0].mxu0
  %1499 = vdwg.mxu0
  %v1500 = vmul.f32 %v1482, 0.33333334
  %v1501 = vmul.f32 %v1487, 0.33333334
  %v1502 = vmul.f32 %v1492, 0.33333334
  %v1503 = vmul.f32 %v1497, 0.33333334
  %v1504 = vmul.f32 %v1006, %v1088
  %v1505 = vmul.f32 %v1006, %v1093
  %v1506 = vmul.f32 %v1006, %v1098
  %v1507 = vmul.f32 %v1006, %v1103
  %v1508 = vmul.f32 %v1012, %v1088
  %v1509 = vmul.f32 %v1012, %v1093
  %v1510 = vmul.f32 %v1012, %v1098
  %v1511 = vmul.f32 %v1012, %v1103
  %v1512 = vmul.f32 %v1018, %v1088
  %v1513 = vmul.f32 %v1018, %v1093
  %v1514 = vmul.f32 %v1018, %v1098
  %v1515 = vmul.f32 %v1018, %v1103
  %1516 = vmatprep.subr.mxu0 0.0
  %1517 = vmatpush1.msra.mxu0 %v1500
  %1518 = vmatprep.subr.mxu0 0.0
  %1519 = vmatpush1.msra.mxu0 %v1501
  %1520 = vmatprep.subr.mxu0 0.0
  %1521 = vmatpush1.msra.mxu0 %v1502
  %1522 = vmatprep.subr.mxu0 0.0
  %1523 = vmatpush1.msra.mxu0 %v1503
  %1524 = vmatprep.subr.mxu0 0.0
  %1525 = vmatpush1.msra.mxu0 %v1504
  %1526 = vmatprep.subr.mxu0 0.0
  %1527 = vmatpush1.msra.mxu0 %v1505
  %1528 = vmatprep.subr.mxu0 0.0
  %1529 = vmatpush1.msra.mxu0 %v1506
  %1530 = vmatprep.subr.mxu0 0.0
  %1531 = vmatpush1.msra.mxu0 %v1507
  %1532 = vmatprep.subr.mxu0 0.0
  %1533 = vmatpush1.msra.mxu0 %v1508
  %1534 = vmatprep.subr.mxu0 0.0
  %1535 = vmatpush1.msra.mxu0 %v1509
  %1536 = vmatprep.subr.mxu0 0.0
  %1537 = vmatpush1.msra.mxu0 %v1510
  %1538 = vmatprep.subr.mxu0 0.0
  %1539 = vmatpush1.msra.mxu0 %v1511
  %1540 = vmatprep.subr.mxu0 0.0
  %1541 = vmatpush1.msra.mxu0 %v1512
  %1542 = vmatprep.subr.mxu0 0.0
  %1543 = vmatpush1.msra.mxu0 %v1513
  %1544 = vmatprep.subr.mxu0 0.0
  %1545 = vmatpush1.msra.mxu0 %v1514
  %1546 = vmatprep.subr.mxu0 0.0
  %1547 = vmatpush1.msra.mxu0 %v1515
  %1548 = vmatprep.subr.mxu0 0.0
  %1549 = vmatpush1.msra.mxu0 0.0
  %1550 = vmatprep.subr.mxu0 0.0
  %1551 = vmatpush1.msra.mxu0 0.0
  %1552 = vmatprep.subr.mxu0 0.0
  %1553 = vmatpush1.msra.mxu0 0.0
  %1554 = vmatprep.subr.mxu0 0.0
  %1555 = vmatpush1.msra.mxu0 0.0
  %1556 = vmatprep.subr.mxu0 0.0
  %1557 = vmatpush1.msra.mxu0 0.0
  %1558 = vmatprep.subr.mxu0 0.0
  %1559 = vmatpush1.msra.mxu0 0.0
  %1560 = vmatprep.subr.mxu0 0.0
  %1561 = vmatpush1.msra.mxu0 0.0
  %1562 = vmatprep.subr.mxu0 0.0
  %1563 = vmatpush1.msra.mxu0 0.0
  %1564 = vmatprep.subr.mxu0 0.0
  %1565 = vmatpush1.msra.mxu0 0.0
  %1566 = vmatprep.subr.mxu0 0.0
  %1567 = vmatpush1.msra.mxu0 0.0
  %1568 = vmatprep.subr.mxu0 0.0
  %1569 = vmatpush1.msra.mxu0 0.0
  %1570 = vmatprep.subr.mxu0 0.0
  %1571 = vmatpush1.msra.mxu0 0.0
  %1572 = vmatprep.subr.mxu0 0.0
  %1573 = vmatpush1.msra.mxu0 0.0
  %1574 = vmatprep.subr.mxu0 0.0
  %1575 = vmatpush1.msra.mxu0 0.0
  %1576 = vmatprep.subr.mxu0 0.0
  %1577 = vmatpush1.msra.mxu0 0.0
  %1578 = vmatprep.subr.mxu0 0.0
  %1579 = vmatpush1.msra.mxu0 0.0
  %1580 = vmatprep.mubr.f32.mxu0 0.0
  %1581 = vmatmul.mubr.f32.gmra.mrb[0].mxu0 %v1186
  %v1582 = vpop.f32.mrb[0].mxu0
  %v1583 = vadd.f32 0.0, %v1582
  %v1584 = vpop.f32.mrb[0].mxu0
  %1585 = vmatprep.mubr.f32.mxu0 0.0
  %1586 = vmatmul.mubr.f32.gmra.mrb[0].mxu0 %v1187
  %v1587 = vpop.f32.mrb[0].mxu0
  %v1588 = vpop.f32.mrb[0].mxu0
  %1589 = vmatprep.mubr.f32.mxu0 0.0
  %1590 = vmatmul.mubr.f32.gmra.mrb[0].mxu0 %v1188
  %v1591 = vpop.f32.mrb[0].mxu0
  %v1592 = vpop.f32.mrb[0].mxu0
  %1593 = vmatprep.mubr.f32.mxu0 0.0
  %1594 = vmatmul.mubr.f32.gmra.mrb[0].mxu0 %v1189
  %v1595 = vpop.f32.mrb[0].mxu0
  %v1596 = vpop.f32.mrb[0].mxu0
  %1597 = vdwg.mxu0
  %v1598 = vld [vmem:[%s13] sm:$0x1]
  %v1599 = vld [vmem:[%s12] sm:$0xff]
  %v1600 = vld [vmem:[%s12 + $0x8] sm:$0xff]
  %v1602 = vsel %vm271, %v1599, 0
  %v1605 = vsel %vm271, %v1600, 0
  %1607 = vmatprep.subr.mxu0 0.0
  %1608 = vmatpush1.msra.mxu0 %v1583
  %1609 = vmatprep.subr.mxu0 0.0
  %1610 = vmatpush1.msra.mxu0 0.0
  %1611 = vmatprep.subr.mxu0 0.0
  %1612 = vmatpush1.msra.mxu0 0.0
  %1613 = vmatprep.subr.mxu0 0.0
  %1614 = vmatpush1.msra.mxu0 0.0
  %1615 = vmatprep.subr.mxu0 0.0
  %1616 = vmatpush1.msra.mxu0 0.0
  %1617 = vmatprep.subr.mxu0 0.0
  %1618 = vmatpush1.msra.mxu0 0.0
  %1619 = vmatprep.subr.mxu0 0.0
  %1620 = vmatpush1.msra.mxu0 0.0
  %1621 = vmatprep.subr.mxu0 0.0
  %1622 = vmatpush1.msra.mxu0 0.0
  %1623 = vmatprep.subr.mxu0 0.0
  %1624 = vmatpush1.msra.mxu0 0.0
  %1625 = vmatprep.subr.mxu0 0.0
  %1626 = vmatpush1.msra.mxu0 0.0
  %1627 = vmatprep.subr.mxu0 0.0
  %1628 = vmatpush1.msra.mxu0 0.0
  %1629 = vmatprep.subr.mxu0 0.0
  %1630 = vmatpush1.msra.mxu0 0.0
  %1631 = vmatprep.subr.mxu0 0.0
  %1632 = vmatpush1.msra.mxu0 0.0
  %1633 = vmatprep.subr.mxu0 0.0
  %1634 = vmatpush1.msra.mxu0 0.0
  %1635 = vmatprep.subr.mxu0 0.0
  %1636 = vmatpush1.msra.mxu0 0.0
  %1637 = vmatprep.subr.mxu0 0.0
  %1638 = vmatpush1.msra.mxu0 0.0
  %1639 = vmatprep.subr.mxu0 0.0
  %1640 = vmatpush1.msra.mxu0 0.0
  %1641 = vmatprep.subr.mxu0 0.0
  %1642 = vmatpush1.msra.mxu0 0.0
  %1643 = vmatprep.subr.mxu0 0.0
  %1644 = vmatpush1.msra.mxu0 0.0
  %1645 = vmatprep.subr.mxu0 0.0
  %1646 = vmatpush1.msra.mxu0 0.0
  %1647 = vmatprep.subr.mxu0 0.0
  %1648 = vmatpush1.msra.mxu0 0.0
  %1649 = vmatprep.subr.mxu0 0.0
  %1650 = vmatpush1.msra.mxu0 0.0
  %1651 = vmatprep.subr.mxu0 0.0
  %1652 = vmatpush1.msra.mxu0 0.0
  %1653 = vmatprep.subr.mxu0 0.0
  %1654 = vmatpush1.msra.mxu0 0.0
  %1655 = vmatprep.subr.mxu0 0.0
  %1656 = vmatpush1.msra.mxu0 0.0
  %1657 = vmatprep.subr.mxu0 0.0
  %1658 = vmatpush1.msra.mxu0 0.0
  %1659 = vmatprep.subr.mxu0 0.0
  %1660 = vmatpush1.msra.mxu0 0.0
  %1661 = vmatprep.subr.mxu0 0.0
  %1662 = vmatpush1.msra.mxu0 0.0
  %1663 = vmatprep.subr.mxu0 0.0
  %1664 = vmatpush1.msra.mxu0 0.0
  %1665 = vmatprep.subr.mxu0 0.0
  %1666 = vmatpush1.msra.mxu0 0.0
  %1667 = vmatprep.subr.mxu0 0.0
  %1668 = vmatpush1.msra.mxu0 0.0
  %1669 = vmatprep.subr.mxu0 0.0
  %1670 = vmatpush1.msra.mxu0 0.0
  %1671 = vmatprep.mubr.f32.mxu0 0.0
  %1672 = vmatmul.mubr.f32.gmra.mrb[0].mxu0 %v1602
  %v1673 = vpop.f32.mrb[0].mxu0
  %v1674 = vadd.f32 0.0, %v1673
  %v1675 = vpop.f32.mrb[0].mxu0
  %1676 = vmatprep.mubr.f32.mxu0 0.0
  %1677 = vmatmul.mubr.f32.gmra.mrb[0].mxu0 %v1605
  %v1678 = vpop.f32.mrb[0].mxu0
  %v1679 = vadd.f32 0.0, %v1678
  %v1680 = vpop.f32.mrb[0].mxu0
  %1681 = vdwg.mxu0
  %v1682 = vsub.f32 0.0, %v1674
  %v1683 = vsub.f32 0.0, %v1679
  %v1684 = vmul.f32 %v1682, 1.442695
  %v1685 = vpow.pop %v1684
  %v1686 = vmul.f32 %v1683, 1.442695
  %v1687 = vpow.pop %v1686
  %v1688 = vadd.f32 %v1685, 1.0
  %v1689 = vadd.f32 %v1687, 1.0
  %v1690 = vrcp.pop %v1688
  %v1691 = vmul.f32 1.0, %v1690
  %v1692 = vrcp.pop %v1689
  %v1693 = vmul.f32 1.0, %v1692
  %v1694 = vmul.f32 %v1674, %v1691
  %v1695 = vmul.f32 %v1679, %v1693
  %vm1696 = vcmask 130048
  %v1698 = vsel %vm1696, %v1598, 0
  %1700 = vmatprep.subr.mxu0 0.0
  %1701 = vmatpush1.msra.mxu0 %v1694
  %1702 = vmatprep.subr.mxu0 0.0
  %1703 = vmatpush1.msra.mxu0 %v1695
  %1704 = vmatprep.subr.mxu0 0.0
  %1705 = vmatpush1.msra.mxu0 0.0
  %1706 = vmatprep.subr.mxu0 0.0
  %1707 = vmatpush1.msra.mxu0 0.0
  %1708 = vmatprep.subr.mxu0 0.0
  %1709 = vmatpush1.msra.mxu0 0.0
  %1710 = vmatprep.subr.mxu0 0.0
  %1711 = vmatpush1.msra.mxu0 0.0
  %1712 = vmatprep.subr.mxu0 0.0
  %1713 = vmatpush1.msra.mxu0 0.0
  %1714 = vmatprep.subr.mxu0 0.0
  %1715 = vmatpush1.msra.mxu0 0.0
  %1716 = vmatprep.subr.mxu0 0.0
  %1717 = vmatpush1.msra.mxu0 0.0
  %1718 = vmatprep.subr.mxu0 0.0
  %1719 = vmatpush1.msra.mxu0 0.0
  %1720 = vmatprep.subr.mxu0 0.0
  %1721 = vmatpush1.msra.mxu0 0.0
  %1722 = vmatprep.subr.mxu0 0.0
  %1723 = vmatpush1.msra.mxu0 0.0
  %1724 = vmatprep.subr.mxu0 0.0
  %1725 = vmatpush1.msra.mxu0 0.0
  %1726 = vmatprep.subr.mxu0 0.0
  %1727 = vmatpush1.msra.mxu0 0.0
  %1728 = vmatprep.subr.mxu0 0.0
  %1729 = vmatpush1.msra.mxu0 0.0
  %1730 = vmatprep.subr.mxu0 0.0
  %1731 = vmatpush1.msra.mxu0 0.0
  %1732 = vmatprep.subr.mxu0 0.0
  %1733 = vmatpush1.msra.mxu0 0.0
  %1734 = vmatprep.subr.mxu0 0.0
  %1735 = vmatpush1.msra.mxu0 0.0
  %1736 = vmatprep.subr.mxu0 0.0
  %1737 = vmatpush1.msra.mxu0 0.0
  %1738 = vmatprep.subr.mxu0 0.0
  %1739 = vmatpush1.msra.mxu0 0.0
  %1740 = vmatprep.subr.mxu0 0.0
  %1741 = vmatpush1.msra.mxu0 0.0
  %1742 = vmatprep.subr.mxu0 0.0
  %1743 = vmatpush1.msra.mxu0 0.0
  %1744 = vmatprep.subr.mxu0 0.0
  %1745 = vmatpush1.msra.mxu0 0.0
  %1746 = vmatprep.subr.mxu0 0.0
  %1747 = vmatpush1.msra.mxu0 0.0
  %1748 = vmatprep.subr.mxu0 0.0
  %1749 = vmatpush1.msra.mxu0 0.0
  %1750 = vmatprep.subr.mxu0 0.0
  %1751 = vmatpush1.msra.mxu0 0.0
  %1752 = vmatprep.subr.mxu0 0.0
  %1753 = vmatpush1.msra.mxu0 0.0
  %1754 = vmatprep.subr.mxu0 0.0
  %1755 = vmatpush1.msra.mxu0 0.0
  %1756 = vmatprep.subr.mxu0 0.0
  %1757 = vmatpush1.msra.mxu0 0.0
  %1758 = vmatprep.subr.mxu0 0.0
  %1759 = vmatpush1.msra.mxu0 0.0
  %1760 = vmatprep.subr.mxu0 0.0
  %1761 = vmatpush1.msra.mxu0 0.0
  %1762 = vmatprep.subr.mxu0 0.0
  %1763 = vmatpush1.msra.mxu0 0.0
  %1764 = vmatprep.mubr.f32.mxu0 0.0
  %1765 = vmatmul.mubr.f32.gmra.mrb[0].mxu0 %v1698
  %v1766 = vpop.f32.mrb[0].mxu0
  %v1767 = vadd.f32 0.0, %v1766
  %v1768 = vpop.f32.mrb[0].mxu0
  %1769 = vdwg.mxu0
  %v1771 = vrot.slane %v1177, 6
  %v1774 = vrot.slane %v1767, 5
  %vm1776 = vcmask 1040384
  %v1777 = vsel %vm1776, %v677, 0.0
  %vm1778 = vcmask 1041408
  %v1779 = vsel %vm1778, %v1777, %v1771
  %v1780 = vsel %vm532, %v1779, %v1774
  %v1782 = vsel %vm271, %v1780, 0
  %1784 = vmatprep.subr.mxu0 0.0
  %1785 = vmatpush1.msra.mxu0 %v88
  %1786 = vmatprep.subr.mxu0 0.0
  %1787 = vmatpush1.msra.mxu0 0.0
  %1788 = vmatprep.subr.mxu0 0.0
  %1789 = vmatpush1.msra.mxu0 0.0
  %1790 = vmatprep.subr.mxu0 0.0
  %1791 = vmatpush1.msra.mxu0 0.0
  %1792 = vmatprep.subr.mxu0 0.0
  %1793 = vmatpush1.msra.mxu0 0.0
  %1794 = vmatprep.subr.mxu0 0.0
  %1795 = vmatpush1.msra.mxu0 0.0
  %1796 = vmatprep.subr.mxu0 0.0
  %1797 = vmatpush1.msra.mxu0 0.0
  %1798 = vmatprep.subr.mxu0 0.0
  %1799 = vmatpush1.msra.mxu0 0.0
  %1800 = vmatprep.subr.mxu0 0.0
  %1801 = vmatpush1.msra.mxu0 0.0
  %1802 = vmatprep.subr.mxu0 0.0
  %1803 = vmatpush1.msra.mxu0 0.0
  %1804 = vmatprep.subr.mxu0 0.0
  %1805 = vmatpush1.msra.mxu0 0.0
  %1806 = vmatprep.subr.mxu0 0.0
  %1807 = vmatpush1.msra.mxu0 0.0
  %1808 = vmatprep.subr.mxu0 0.0
  %1809 = vmatpush1.msra.mxu0 0.0
  %1810 = vmatprep.subr.mxu0 0.0
  %1811 = vmatpush1.msra.mxu0 0.0
  %1812 = vmatprep.subr.mxu0 0.0
  %1813 = vmatpush1.msra.mxu0 0.0
  %1814 = vmatprep.subr.mxu0 0.0
  %1815 = vmatpush1.msra.mxu0 0.0
  %1816 = vmatprep.subr.mxu0 0.0
  %1817 = vmatpush1.msra.mxu0 0.0
  %1818 = vmatprep.subr.mxu0 0.0
  %1819 = vmatpush1.msra.mxu0 0.0
  %1820 = vmatprep.subr.mxu0 0.0
  %1821 = vmatpush1.msra.mxu0 0.0
  %1822 = vmatprep.subr.mxu0 0.0
  %1823 = vmatpush1.msra.mxu0 0.0
  %1824 = vmatprep.subr.mxu0 0.0
  %1825 = vmatpush1.msra.mxu0 0.0
  %1826 = vmatprep.subr.mxu0 0.0
  %1827 = vmatpush1.msra.mxu0 0.0
  %1828 = vmatprep.subr.mxu0 0.0
  %1829 = vmatpush1.msra.mxu0 0.0
  %1830 = vmatprep.subr.mxu0 0.0
  %1831 = vmatpush1.msra.mxu0 0.0
  %1832 = vmatprep.subr.mxu0 0.0
  %1833 = vmatpush1.msra.mxu0 0.0
  %1834 = vmatprep.subr.mxu0 0.0
  %1835 = vmatpush1.msra.mxu0 0.0
  %1836 = vmatprep.subr.mxu0 0.0
  %1837 = vmatpush1.msra.mxu0 0.0
  %1838 = vmatprep.subr.mxu0 0.0
  %1839 = vmatpush1.msra.mxu0 0.0
  %1840 = vmatprep.subr.mxu0 0.0
  %1841 = vmatpush1.msra.mxu0 0.0
  %1842 = vmatprep.subr.mxu0 0.0
  %1843 = vmatpush1.msra.mxu0 0.0
  %1844 = vmatprep.subr.mxu0 0.0
  %1845 = vmatpush1.msra.mxu0 0.0
  %1846 = vmatprep.subr.mxu0 0.0
  %1847 = vmatpush1.msra.mxu0 0.0
  %1848 = vmatprep.mubr.f32.mxu0 0.0
  %1849 = vmatmul.mubr.f32.gmra.mrb[0].mxu0 %v1782
  %v1850 = vpop.f32.mrb[0].mxu0
  %v1851 = vadd.f32 0.0, %v1850
  %v1852 = vpop.f32.mrb[0].mxu0
  %1853 = vdwg.mxu0
  %vm1854 = vcmask 11264
  %1855 = vst.msk [vmem:[%s14] sm:$0xf] %vm1854, %v1851
  // Predicated region
  $region58: #{mace_forward.1} parent=0 // pred_check
    _
  $region59: #{mace_forward.1} parent=0 // pred_check_branch
    %1857 = sbr.rel (0) target = $region61
  $region60: #{mace_forward.1} parent=0 // pred_region
    _
  $region61: #{mace_forward.1} parent=0 // pred_fallthru
    _
  // Predicated region
  $region62: #{mace_forward.1} parent=0 // pred_check
    _
  $region63: #{mace_forward.1} parent=0 // pred_check_branch
    %1859 = sbr.rel (0) target = $region65
  $region64: #{mace_forward.1} parent=0 // pred_region
    _
  $region65: #{mace_forward.1} parent=0 // pred_fallthru
    _

</llo_original>
